<compile_context>
chip_gen: v5e
topology: v5e:2x2
jax: 0.10.0
libtpu: 0.0.40
codegen_flags: <defaults>
</compile_context>

<pallas_src>
import functools

import jax
import jax.numpy as jnp
from jax import lax
from jax.experimental import pallas as pl
from jax.experimental.pallas import tpu as pltpu


def _pick_tile_h(H, W, target_rows=512):
    """Largest divisor of H so a (TH*W, C) chunk stays VMEM/vreg friendly."""
    best = 1
    for th in range(1, H + 1):
        if H % th == 0 and th * W <= target_rows:
            best = th
    return best


def bottleneck_kernel(x_ref, w1_ref, b1_ref, w2_ref, b2_ref, w3_ref, b3_ref,
                      out_ref, pad_ref, *, H, W, Cin, width, Cout, TH):
    f32 = jnp.float32
    bf16 = jnp.bfloat16
    num_chunks = H // TH

    # Zero only the 1-pixel halo border of the persistent VMEM scratch.
    # (Interior is fully overwritten each step; border-only zeroing is cheap and
    #  remains correct if the batch grid axis is sharded across TensorCores.)
    zrow = jnp.zeros((1, W + 2, width), f32)
    zcol = jnp.zeros((H + 2, 1, width), f32)
    pad_ref[0:1, :, :] = zrow
    pad_ref[H + 1:H + 2, :, :] = zrow
    pad_ref[:, 0:1, :] = zcol
    pad_ref[:, W + 1:W + 2, :] = zcol

    # Hoist small operands out of the chunk loops (single VMEM load each per step).
    w1 = w1_ref[...]
    w2 = w2_ref[...]
    w3 = w3_ref[...]
    b1 = b1_ref[...]
    b2 = b2_ref[...]
    b3 = b3_ref[...]

    # ---- stage 1: 1x1 conv (BN scale folded into w1) + bias + ReLU ----------
    for c in range(num_chunks):
        h0 = c * TH
        xb = x_ref[0, h0:h0 + TH, :, :].reshape(TH * W, Cin).astype(bf16)
        t1 = jnp.dot(xb, w1, preferred_element_type=f32)
        t1 = jnp.maximum(t1 + b1, 0.0)
        pad_ref[1 + h0:1 + h0 + TH, 1:W + 1, :] = t1.reshape(TH, W, width)

    # ---- stage 2 (3x3 conv as one im2col matmul) + stage 3 + residual -------
    for c in range(num_chunks):
        h0 = c * TH
        taps = []
        for dy in range(3):
            for dx in range(3):
                win = pad_ref[h0 + dy:h0 + dy + TH, dx:dx + W, :]
                taps.append(win.reshape(TH * W, width).astype(bf16))
        patch = jnp.concatenate(taps, axis=-1)                  # (TH*W, 9*width)
        t2 = jnp.dot(patch, w2, preferred_element_type=f32)
        t2 = jnp.maximum(t2 + b2, 0.0)

        t3 = jnp.dot(t2.astype(bf16), w3, preferred_element_type=f32) + b3

        identity = x_ref[0, h0:h0 + TH, :, :].reshape(TH * W, Cout)
        out_ref[0, h0:h0 + TH, :, :] = (t3 + identity).reshape(TH, W, Cout)


@jax.jit
def bottleneck_forward(x_nchw, params):
    """x_nchw: (N, Cin, H, W) float32. Returns (relu, out) in NCHW."""
    (w1, s1, b1, w2, s2, b2, w3, s3, b3) = params
    N, Cin, H, W = x_nchw.shape
    width = w1.shape[1]
    Cout = w3.shape[1]
    assert Cout == Cin, "identity add requires inplanes == planes*expansion"
    TH = _pick_tile_h(H, W)

    # Fold BN scale into conv weights (per output channel); biases stay f32.
    w1f = (w1 * s1).astype(jnp.bfloat16)                                   # (Cin, width)
    w2f = (w2 * s2.reshape(1, 1, 1, width)).reshape(9 * width, width)      # (9*width, width)
    w2f = w2f.astype(jnp.bfloat16)
    w3f = (w3 * s3).astype(jnp.bfloat16)                                   # (width, Cout)
    b1f = b1.astype(jnp.float32)
    b2f = b2.astype(jnp.float32)
    b3f = b3.astype(jnp.float32)

    # Kernel operates in NHWC (channels on the lane axis).
    x_nhwc = jnp.transpose(x_nchw, (0, 2, 3, 1)).astype(jnp.float32)

    kernel = functools.partial(bottleneck_kernel, H=H, W=W, Cin=Cin,
                               width=width, Cout=Cout, TH=TH)

    out_nhwc = pl.pallas_call(
        kernel,
        out_shape=jax.ShapeDtypeStruct((N, H, W, Cout), jnp.float32),
        grid_spec=pltpu.PrefetchScalarGridSpec(
            num_scalar_prefetch=0,
            grid=(N,),
            in_specs=[
                pl.BlockSpec((1, H, W, Cin), lambda b: (b, 0, 0, 0)),
                pl.BlockSpec((Cin, width), lambda b: (0, 0)),
                pl.BlockSpec((1, width), lambda b: (0, 0)),
                pl.BlockSpec((9 * width, width), lambda b: (0, 0)),
                pl.BlockSpec((1, width), lambda b: (0, 0)),
                pl.BlockSpec((width, Cout), lambda b: (0, 0)),
                pl.BlockSpec((1, Cout), lambda b: (0, 0)),
            ],
            out_specs=pl.BlockSpec((1, H, W, Cout), lambda b: (b, 0, 0, 0)),
            scratch_shapes=[pltpu.VMEM((H + 2, W + 2, width), jnp.float32)],
        ),
        compiler_params=pltpu.CompilerParams(
            dimension_semantics=("parallel",),
            vmem_limit_bytes=32 * 1024 * 1024,
        ),
    )(x_nhwc, w1f, b1f, w2f, b2f, w3f, b3f)

    out = jnp.transpose(out_nhwc, (0, 3, 1, 2))
    relu = jnp.maximum(out, 0.0)   # fuses with the transpose epilogue under jit
    return relu, out


def _fold_bn(gamma, beta, mean, var, eps=1e-5):
    scale = gamma / jnp.sqrt(var + eps)
    bias = beta - mean * scale
    return (scale.reshape(1, -1).astype(jnp.float32),
            bias.reshape(1, -1).astype(jnp.float32))


def make_params(key, inplanes, planes, base_width=64, groups=1, expansion=4):
    width = int(planes * (base_width / 64.0)) * groups
    cout = planes * expansion
    ks = jax.random.split(key, 15)
    # conv weights in matmul-friendly layouts: conv1x1 (Cin,Cout); conv3x3 (3,3,Cin,Cout)
    w1 = jax.random.normal(ks[0], (inplanes, width), jnp.float32) * 0.1
    w2 = jax.random.normal(ks[1], (3, 3, width, width), jnp.float32) * 0.1
    w3 = jax.random.normal(ks[2], (width, cout), jnp.float32) * 0.1
    bn = []
    for i, c in enumerate((width, width, cout)):
        g = 1.0 + 0.1 * jax.random.normal(ks[3 + 4 * i], (c,), jnp.float32)
        b = 0.1 * jax.random.normal(ks[4 + 4 * i], (c,), jnp.float32)
        m = 0.1 * jax.random.normal(ks[5 + 4 * i], (c,), jnp.float32)
        v = jnp.abs(1.0 + 0.1 * jax.random.normal(ks[6 + 4 * i], (c,), jnp.float32))
        bn.append(_fold_bn(g, b, m, v))
    (s1, b1), (s2, b2), (s3, b3) = bn
    return (w1, s1, b1, w2, s2, b2, w3, s3, b3)


def reference_forward(x_nchw, params):
    """Pure-JAX f32 NCHW reference mirroring the PyTorch module (eval-mode BN)."""
    (w1, s1, b1, w2, s2, b2, w3, s3, b3) = params

    def conv1x1(x, w):  # w: (Cin, Cout)
        k = jnp.transpose(w, (1, 0))[:, :, None, None]  # OIHW
        return lax.conv_general_dilated(x, k, (1, 1), "VALID",
                                        dimension_numbers=("NCHW", "OIHW", "NCHW"))

    def conv3x3(x, w):  # w: (3,3,Cin,Cout)
        k = jnp.transpose(w, (3, 2, 0, 1))               # OIHW
        return lax.conv_general_dilated(x, k, (1, 1), ((1, 1), (1, 1)),
                                        dimension_numbers=("NCHW", "OIHW", "NCHW"))

    def bn(x, s, b):
        return x * s.reshape(1, -1, 1, 1) + b.reshape(1, -1, 1, 1)

    t = jnp.maximum(bn(conv1x1(x_nchw, w1), s1, b1), 0.0)
    t = jnp.maximum(bn(conv3x3(t, w2), s2, b2), 0.0)
    t = bn(conv1x1(t, w3), s3, b3)
    out = t + x_nchw
    return jnp.maximum(out, 0.0), out


if __name__ == "__main__":
    # planes=8, expansion=4 -> inplanes=32 so the identity shortcut is valid
    # (downsample=None, stride=1).
    N, planes, H, W = 2, 8, 16, 16
    inplanes = planes * 4
    key = jax.random.PRNGKey(0)
    kx, kp = jax.random.split(key)
    x = jax.random.normal(kx, (N, inplanes, H, W), jnp.float32)
    params = make_params(kp, inplanes, planes)

    relu, out = jax.block_until_ready(bottleneck_forward(x, params))
    relu_ref, out_ref = reference_forward(x, params)

    assert relu.shape == (N, inplanes, H, W) and out.shape == (N, inplanes, H, W)
    # bf16 matmul operands (f32 accumulate) -> loosened tolerances vs the f32 reference.
    assert jnp.allclose(out, out_ref, rtol=5e-2, atol=5e-2)
    assert jnp.allclose(relu, relu_ref, rtol=5e-2, atol=5e-2)
    print("KERNEL_OK")
</pallas_src>

<mosaic_0001>
module attributes {stable_mosaic.version = 11 : i64} {
  func.func @bottleneck_kernel(%arg0: i32, %arg1: memref<1x16x16x32xf32, #tpu.memory_space<vmem>>, %arg2: memref<32x8xbf16, #tpu.memory_space<vmem>>, %arg3: memref<1x8xf32, #tpu.memory_space<vmem>>, %arg4: memref<72x8xbf16, #tpu.memory_space<vmem>>, %arg5: memref<1x8xf32, #tpu.memory_space<vmem>>, %arg6: memref<8x32xbf16, #tpu.memory_space<vmem>>, %arg7: memref<1x32xf32, #tpu.memory_space<vmem>>, %arg8: memref<1x16x16x32xf32, #tpu.memory_space<vmem>>, %arg9: memref<18x18x8xf32, #tpu.memory_space<vmem>>) attributes {dimension_semantics = [#tpu.dimension_semantics<parallel>], iteration_bounds = array<i64: 2>, scalar_prefetch = 0 : i64, scratch_operands = 1 : i64, tpu.core_type = #tpu.core_type<tc>, window_params = [{transform_indices = @transform_0, window_bounds = array<i64: 1, 16, 16, 32>}, {pipeline_mode = #tpu.pipeline_mode<synchronous>, transform_indices = @transform_1, window_bounds = array<i64: 32, 8>}, {pipeline_mode = #tpu.pipeline_mode<synchronous>, transform_indices = @transform_2, window_bounds = array<i64: 1, 8>}, {pipeline_mode = #tpu.pipeline_mode<synchronous>, transform_indices = @transform_3, window_bounds = array<i64: 72, 8>}, {pipeline_mode = #tpu.pipeline_mode<synchronous>, transform_indices = @transform_4, window_bounds = array<i64: 1, 8>}, {pipeline_mode = #tpu.pipeline_mode<synchronous>, transform_indices = @transform_5, window_bounds = array<i64: 8, 32>}, {pipeline_mode = #tpu.pipeline_mode<synchronous>, transform_indices = @transform_6, window_bounds = array<i64: 1, 32>}, {transform_indices = @transform_7, window_bounds = array<i64: 1, 16, 16, 32>}]} {
    %cst = arith.constant 0.000000e+00 : f32
    %0 = vector.broadcast %cst : f32 to vector<1x18x8xf32>
    %cst_0 = arith.constant 0.000000e+00 : f32
    %1 = vector.broadcast %cst_0 : f32 to vector<18x1x8xf32>
    %c0 = arith.constant 0 : index
    %c0_1 = arith.constant 0 : index
    %c0_2 = arith.constant 0 : index
    %2 = vector.load %arg9[%c0, %c0_1, %c0_2] : memref<18x18x8xf32, #tpu.memory_space<vmem>>, vector<1x18x8xf32>
    tpu.vector_store %arg9[%c0, %c0_1, %c0_2], %0 {strides = array<i32>} : memref<18x18x8xf32, #tpu.memory_space<vmem>>, vector<1x18x8xf32>,
    %c17 = arith.constant 17 : index
    %c0_3 = arith.constant 0 : index
    %c0_4 = arith.constant 0 : index
    %3 = vector.load %arg9[%c17, %c0_3, %c0_4] : memref<18x18x8xf32, #tpu.memory_space<vmem>>, vector<1x18x8xf32>
    tpu.vector_store %arg9[%c17, %c0_3, %c0_4], %0 {strides = array<i32>} : memref<18x18x8xf32, #tpu.memory_space<vmem>>, vector<1x18x8xf32>,
    %c0_5 = arith.constant 0 : index
    %c0_6 = arith.constant 0 : index
    %c0_7 = arith.constant 0 : index
    %4 = vector.load %arg9[%c0_5, %c0_6, %c0_7] : memref<18x18x8xf32, #tpu.memory_space<vmem>>, vector<18x1x8xf32>
    tpu.vector_store %arg9[%c0_5, %c0_6, %c0_7], %1 {strides = array<i32>} : memref<18x18x8xf32, #tpu.memory_space<vmem>>, vector<18x1x8xf32>,
    %c0_8 = arith.constant 0 : index
    %c17_9 = arith.constant 17 : index
    %c0_10 = arith.constant 0 : index
    %5 = vector.load %arg9[%c0_8, %c17_9, %c0_10] : memref<18x18x8xf32, #tpu.memory_space<vmem>>, vector<18x1x8xf32>
    tpu.vector_store %arg9[%c0_8, %c17_9, %c0_10], %1 {strides = array<i32>} : memref<18x18x8xf32, #tpu.memory_space<vmem>>, vector<18x1x8xf32>,
    %c0_11 = arith.constant 0 : index
    %c0_12 = arith.constant 0 : index
    %6 = vector.load %arg2[%c0_11, %c0_12] : memref<32x8xbf16, #tpu.memory_space<vmem>>, vector<32x8xbf16>
    %c0_13 = arith.constant 0 : index
    %c0_14 = arith.constant 0 : index
    %7 = vector.load %arg4[%c0_13, %c0_14] : memref<72x8xbf16, #tpu.memory_space<vmem>>, vector<72x8xbf16>
    %c0_15 = arith.constant 0 : index
    %c0_16 = arith.constant 0 : index
    %8 = vector.load %arg6[%c0_15, %c0_16] : memref<8x32xbf16, #tpu.memory_space<vmem>>, vector<8x32xbf16>
    %c0_17 = arith.constant 0 : index
    %c0_18 = arith.constant 0 : index
    %9 = vector.load %arg3[%c0_17, %c0_18] : memref<1x8xf32, #tpu.memory_space<vmem>>, vector<1x8xf32>
    %c0_19 = arith.constant 0 : index
    %c0_20 = arith.constant 0 : index
    %10 = vector.load %arg5[%c0_19, %c0_20] : memref<1x8xf32, #tpu.memory_space<vmem>>, vector<1x8xf32>
    %c0_21 = arith.constant 0 : index
    %c0_22 = arith.constant 0 : index
    %11 = vector.load %arg7[%c0_21, %c0_22] : memref<1x32xf32, #tpu.memory_space<vmem>>, vector<1x32xf32>
    %c0_23 = arith.constant 0 : index
    %c0_24 = arith.constant 0 : index
    %c0_25 = arith.constant 0 : index
    %c0_26 = arith.constant 0 : index
    %12 = vector.load %arg1[%c0_23, %c0_24, %c0_25, %c0_26] : memref<1x16x16x32xf32, #tpu.memory_space<vmem>>, vector<1x16x16x32xf32>
    %13 = vector.shape_cast %12 : vector<1x16x16x32xf32> to vector<16x16x32xf32>
    %14 = vector.shape_cast %13 : vector<16x16x32xf32> to vector<256x32xf32>
    %15 = arith.truncf %14 : vector<256x32xf32> to vector<256x32xbf16>
    %cst_27 = arith.constant dense<0.000000e+00> : vector<256x8xf32>
    %16 = tpu.matmul %15, %6, %cst_27 {dimension_numbers = #tpu.dot_dimension_numbers<[1], [0], [0], [1], [0, 0, 1, 1], [], []>} : vector<256x32xbf16>, vector<32x8xbf16>, vector<256x8xf32> -> vector<256x8xf32>
    %17 = vector.broadcast %9 : vector<1x8xf32> to vector<256x8xf32>
    %18 = arith.addf %16, %17 : vector<256x8xf32>
    %cst_28 = arith.constant 0.000000e+00 : f32
    %19 = vector.broadcast %cst_28 : f32 to vector<256x8xf32>
    %20 = arith.maximumf %18, %19 : vector<256x8xf32>
    %21 = vector.shape_cast %20 : vector<256x8xf32> to vector<16x16x8xf32>
    %c1 = arith.constant 1 : index
    %c1_29 = arith.constant 1 : index
    %c0_30 = arith.constant 0 : index
    %22 = vector.load %arg9[%c1, %c1_29, %c0_30] : memref<18x18x8xf32, #tpu.memory_space<vmem>>, vector<16x16x8xf32>
    tpu.vector_store %arg9[%c1, %c1_29, %c0_30], %21 {strides = array<i32>} : memref<18x18x8xf32, #tpu.memory_space<vmem>>, vector<16x16x8xf32>,
    %c0_31 = arith.constant 0 : index
    %c0_32 = arith.constant 0 : index
    %c0_33 = arith.constant 0 : index
    %23 = vector.load %arg9[%c0_31, %c0_32, %c0_33] : memref<18x18x8xf32, #tpu.memory_space<vmem>>, vector<16x16x8xf32>
    %24 = vector.shape_cast %23 : vector<16x16x8xf32> to vector<256x8xf32>
    %25 = arith.truncf %24 : vector<256x8xf32> to vector<256x8xbf16>
    %c0_34 = arith.constant 0 : index
    %c1_35 = arith.constant 1 : index
    %c0_36 = arith.constant 0 : index
    %26 = vector.load %arg9[%c0_34, %c1_35, %c0_36] : memref<18x18x8xf32, #tpu.memory_space<vmem>>, vector<16x16x8xf32>
    %27 = vector.shape_cast %26 : vector<16x16x8xf32> to vector<256x8xf32>
    %28 = arith.truncf %27 : vector<256x8xf32> to vector<256x8xbf16>
    %c0_37 = arith.constant 0 : index
    %c2 = arith.constant 2 : index
    %c0_38 = arith.constant 0 : index
    %29 = vector.load %arg9[%c0_37, %c2, %c0_38] : memref<18x18x8xf32, #tpu.memory_space<vmem>>, vector<16x16x8xf32>
    %30 = vector.shape_cast %29 : vector<16x16x8xf32> to vector<256x8xf32>
    %31 = arith.truncf %30 : vector<256x8xf32> to vector<256x8xbf16>
    %c1_39 = arith.constant 1 : index
    %c0_40 = arith.constant 0 : index
    %c0_41 = arith.constant 0 : index
    %32 = vector.load %arg9[%c1_39, %c0_40, %c0_41] : memref<18x18x8xf32, #tpu.memory_space<vmem>>, vector<16x16x8xf32>
    %33 = vector.shape_cast %32 : vector<16x16x8xf32> to vector<256x8xf32>
    %34 = arith.truncf %33 : vector<256x8xf32> to vector<256x8xbf16>
    %c1_42 = arith.constant 1 : index
    %c1_43 = arith.constant 1 : index
    %c0_44 = arith.constant 0 : index
    %35 = vector.load %arg9[%c1_42, %c1_43, %c0_44] : memref<18x18x8xf32, #tpu.memory_space<vmem>>, vector<16x16x8xf32>
    %36 = vector.shape_cast %35 : vector<16x16x8xf32> to vector<256x8xf32>
    %37 = arith.truncf %36 : vector<256x8xf32> to vector<256x8xbf16>
    %c1_45 = arith.constant 1 : index
    %c2_46 = arith.constant 2 : index
    %c0_47 = arith.constant 0 : index
    %38 = vector.load %arg9[%c1_45, %c2_46, %c0_47] : memref<18x18x8xf32, #tpu.memory_space<vmem>>, vector<16x16x8xf32>
    %39 = vector.shape_cast %38 : vector<16x16x8xf32> to vector<256x8xf32>
    %40 = arith.truncf %39 : vector<256x8xf32> to vector<256x8xbf16>
    %c2_48 = arith.constant 2 : index
    %c0_49 = arith.constant 0 : index
    %c0_50 = arith.constant 0 : index
    %41 = vector.load %arg9[%c2_48, %c0_49, %c0_50] : memref<18x18x8xf32, #tpu.memory_space<vmem>>, vector<16x16x8xf32>
    %42 = vector.shape_cast %41 : vector<16x16x8xf32> to vector<256x8xf32>
    %43 = arith.truncf %42 : vector<256x8xf32> to vector<256x8xbf16>
    %c2_51 = arith.constant 2 : index
    %c1_52 = arith.constant 1 : index
    %c0_53 = arith.constant 0 : index
    %44 = vector.load %arg9[%c2_51, %c1_52, %c0_53] : memref<18x18x8xf32, #tpu.memory_space<vmem>>, vector<16x16x8xf32>
    %45 = vector.shape_cast %44 : vector<16x16x8xf32> to vector<256x8xf32>
    %46 = arith.truncf %45 : vector<256x8xf32> to vector<256x8xbf16>
    %c2_54 = arith.constant 2 : index
    %c2_55 = arith.constant 2 : index
    %c0_56 = arith.constant 0 : index
    %47 = vector.load %arg9[%c2_54, %c2_55, %c0_56] : memref<18x18x8xf32, #tpu.memory_space<vmem>>, vector<16x16x8xf32>
    %48 = vector.shape_cast %47 : vector<16x16x8xf32> to vector<256x8xf32>
    %49 = arith.truncf %48 : vector<256x8xf32> to vector<256x8xbf16>
    %50 = tpu.concatenate %25, %28, %31, %34, %37, %40, %43, %46, %49 in 1 : vector<256x8xbf16>, vector<256x8xbf16>, vector<256x8xbf16>, vector<256x8xbf16>, vector<256x8xbf16>, vector<256x8xbf16>, vector<256x8xbf16>, vector<256x8xbf16>, vector<256x8xbf16> -> vector<256x72xbf16>
    %cst_57 = arith.constant dense<0.000000e+00> : vector<256x8xf32>
    %51 = tpu.matmul %50, %7, %cst_57 {dimension_numbers = #tpu.dot_dimension_numbers<[1], [0], [0], [1], [0, 0, 1, 1], [], []>} : vector<256x72xbf16>, vector<72x8xbf16>, vector<256x8xf32> -> vector<256x8xf32>
    %52 = vector.broadcast %10 : vector<1x8xf32> to vector<256x8xf32>
    %53 = arith.addf %51, %52 : vector<256x8xf32>
    %cst_58 = arith.constant 0.000000e+00 : f32
    %54 = vector.broadcast %cst_58 : f32 to vector<256x8xf32>
    %55 = arith.maximumf %53, %54 : vector<256x8xf32>
    %56 = arith.truncf %55 : vector<256x8xf32> to vector<256x8xbf16>
    %cst_59 = arith.constant dense<0.000000e+00> : vector<256x32xf32>
    %57 = tpu.matmul %56, %8, %cst_59 {dimension_numbers = #tpu.dot_dimension_numbers<[1], [0], [0], [1], [0, 0, 1, 1], [], []>} : vector<256x8xbf16>, vector<8x32xbf16>, vector<256x32xf32> -> vector<256x32xf32>
    %58 = vector.broadcast %11 : vector<1x32xf32> to vector<256x32xf32>
    %59 = arith.addf %57, %58 : vector<256x32xf32>
    %c0_60 = arith.constant 0 : index
    %c0_61 = arith.constant 0 : index
    %c0_62 = arith.constant 0 : index
    %c0_63 = arith.constant 0 : index
    %60 = vector.load %arg1[%c0_60, %c0_61, %c0_62, %c0_63] : memref<1x16x16x32xf32, #tpu.memory_space<vmem>>, vector<1x16x16x32xf32>
    %61 = vector.shape_cast %60 : vector<1x16x16x32xf32> to vector<16x16x32xf32>
    %62 = vector.shape_cast %61 : vector<16x16x32xf32> to vector<256x32xf32>
    %63 = arith.addf %59, %62 : vector<256x32xf32>
    %64 = vector.shape_cast %63 : vector<256x32xf32> to vector<16x16x32xf32>
    %c0_64 = arith.constant 0 : index
    %c0_65 = arith.constant 0 : index
    %c0_66 = arith.constant 0 : index
    %c0_67 = arith.constant 0 : index
    %65 = vector.load %arg8[%c0_64, %c0_65, %c0_66, %c0_67] : memref<1x16x16x32xf32, #tpu.memory_space<vmem>>, vector<1x16x16x32xf32>
    %66 = vector.shape_cast %65 : vector<1x16x16x32xf32> to vector<16x16x32xf32>
    %67 = vector.shape_cast %64 : vector<16x16x32xf32> to vector<1x16x16x32xf32>
    tpu.vector_store %arg8[%c0_64, %c0_65, %c0_66, %c0_67], %67 {strides = array<i32>} : memref<1x16x16x32xf32, #tpu.memory_space<vmem>>, vector<1x16x16x32xf32>,
    return
  }
  func.func @transform_0(%arg0: i32) -> (i32, i32, i32, i32) {
    %c0_i32 = arith.constant 0 : i32
    %c0_i32_0 = arith.constant 0 : i32
    %c0_i32_1 = arith.constant 0 : i32
    %c0_i32_2 = arith.constant 0 : i32
    return %arg0, %c0_i32, %c0_i32_0, %c0_i32_1 : i32, i32, i32, i32
  }
  func.func @transform_1(%arg0: i32) -> (i32, i32) {
    %c0_i32 = arith.constant 0 : i32
    %c0_i32_0 = arith.constant 0 : i32
    %c0_i32_1 = arith.constant 0 : i32
    return %c0_i32, %c0_i32_0 : i32, i32
  }
  func.func @transform_2(%arg0: i32) -> (i32, i32) {
    %c0_i32 = arith.constant 0 : i32
    %c0_i32_0 = arith.constant 0 : i32
    %c0_i32_1 = arith.constant 0 : i32
    return %c0_i32, %c0_i32_0 : i32, i32
  }
  func.func @transform_3(%arg0: i32) -> (i32, i32) {
    %c0_i32 = arith.constant 0 : i32
    %c0_i32_0 = arith.constant 0 : i32
    %c0_i32_1 = arith.constant 0 : i32
    return %c0_i32, %c0_i32_0 : i32, i32
  }
  func.func @transform_4(%arg0: i32) -> (i32, i32) {
    %c0_i32 = arith.constant 0 : i32
    %c0_i32_0 = arith.constant 0 : i32
    %c0_i32_1 = arith.constant 0 : i32
    return %c0_i32, %c0_i32_0 : i32, i32
  }
  func.func @transform_5(%arg0: i32) -> (i32, i32) {
    %c0_i32 = arith.constant 0 : i32
    %c0_i32_0 = arith.constant 0 : i32
    %c0_i32_1 = arith.constant 0 : i32
    return %c0_i32, %c0_i32_0 : i32, i32
  }
  func.func @transform_6(%arg0: i32) -> (i32, i32) {
    %c0_i32 = arith.constant 0 : i32
    %c0_i32_0 = arith.constant 0 : i32
    %c0_i32_1 = arith.constant 0 : i32
    return %c0_i32, %c0_i32_0 : i32, i32
  }
  func.func @transform_7(%arg0: i32) -> (i32, i32, i32, i32) {
    %c0_i32 = arith.constant 0 : i32
    %c0_i32_0 = arith.constant 0 : i32
    %c0_i32_1 = arith.constant 0 : i32
    %c0_i32_2 = arith.constant 0 : i32
    return %arg0, %c0_i32, %c0_i32_0, %c0_i32_1 : i32, i32, i32, i32
  }
}

</mosaic_0001>

<llo_original>
// kernel: bottleneck_forward.1
$region0: #{bottleneck_forward.1}
  #allocation0 [shape = 'u32[]', space=smem, size = 0x4, offset = 0x4, fixed_abs, tag = 'smem constant byte address 0x4 - core index']
  #allocation1 [shape = 'u32[72,128]{1,0:T(1,128)}', space=vmem, size = 0x9000, scoped, tag = 'internal scratch']
  #allocation2 [shape = 'f32[18,18,8]{2,1,0:T(8,128)}', space=vmem, size = 0x36000, scoped, tag = 'scratch operand']
  %s0 = inlined_call_operand.hbm [shape: f32[2,16,16,32], index: 0, kind: input, shape index: {}]
  %s1 = inlined_call_operand.vmem [shape: bf16[32,8], index: 1, kind: input, shape index: {}]
  %s2 = inlined_call_operand.vmem [shape: f32[1,8], index: 2, kind: input, shape index: {}]
  %s3 = inlined_call_operand.vmem [shape: bf16[72,8], index: 3, kind: input, shape index: {}]
  %s4 = inlined_call_operand.vmem [shape: f32[1,8], index: 4, kind: input, shape index: {}]
  %s5 = inlined_call_operand.vmem [shape: bf16[8,32], index: 5, kind: input, shape index: {}]
  %s6 = inlined_call_operand.vmem [shape: f32[1,32], index: 6, kind: input, shape index: {}]
  %s7 = inlined_call_operand.vmem [shape: f32[2,16,16,32], index: 7, kind: output, shape index: {}]
  %s8 = sld [smem:[#allocation0]]
  $region65: #{bottleneck_forward.1} parent=0
    _
  %s10 = ssub.s32 1, %s8
  %s11 = scalar_select 0, %s10, %s8
  $region1: #{bottleneck_forward.1} parent=0
    #allocation3 [shape = 'u8[262144]{0}', space=vmem, size = 0x40000, scoped, tag = 'input window, operand 0']
    #allocation4 [shape = 's32[2]{0}', space=sflag, size = 0x8, scoped, tag = 'scoped memory for bottleneck_forward.1']
    %12 = vsyncpa [#allocation4], 0
    %s13 = scalar_lea.sflag [#allocation4], 1
    %14 = vsyncpa %s13, 0
    loop: start=0, step=1, limit=4
    $region2: #{bottleneck_forward.1} parent=1 // loop_pre_header
      _
    $region3: #{bottleneck_forward.1} parent=1 // loop_header
      %s16 = sphi 0, %s20
      %p17 = scmp.ge.s32.totalorder %s16, 4
      %s26 = sphi 0, %s28
      %s29 = sphi 0, %s26
      %s30 = sphi 0, %s29
      %s46 = sphi 0, %s30
      %s50 = sphi 0, %s50
      %s52 = sphi 0, %s50
      %s53 = sphi 0, %s52
      %s67 = sphi 0, %s53
      %s71 = sphi 0, %s71
      %s73 = sphi 0, %s71
      %s74 = sphi 0, %s73
      %s88 = sphi 0, %s74
      %s92 = sphi 0, %s92
      %s94 = sphi 0, %s92
      %s95 = sphi 0, %s94
      %s109 = sphi 0, %s95
      %s113 = sphi 0, %s113
      %s115 = sphi 0, %s113
      %s116 = sphi 0, %s115
      %s130 = sphi 0, %s116
      %s134 = sphi 0, %s134
      %s136 = sphi 0, %s134
      %s137 = sphi 0, %s136
      %s151 = sphi 0, %s137
      %s155 = sphi 0, %s155
      %s157 = sphi 0, %s155
      %s158 = sphi 0, %s157
      %s172 = sphi 0, %s158
      %s178 = sphi 0, %s180
      %s181 = sphi 0, %s178
      %s182 = sphi 0, %s181
      %s198 = sphi 0, %s182
    $region4: #{bottleneck_forward.1} parent=1 // loop_header_branch
      %19 = sbr.rel (%p17) target = $region8
    $region5: #{bottleneck_forward.1} parent=1 // loop_body
      %s21 = ssub.s32 %s16, 1
      %s22 = ssub.s32 %s16, 2
      %s23 = sadd.s32 %s16, 1
      %s24 = ssub.s32 %s16, %s23
      %p25 = scmp.eq.s32.totalorder %s24, 0
      %s27 = sadd.s32 %s26, 1
      %s28 = scalar_select %p25, %s26, %s27
      %p31 = pneg %p25
      %p32 = scmp.eq.s32.totalorder %s16, 1
      %p33 = por %p31, %p32
      %p34 = scmp.ne.s32.totalorder %s26, %s29
      %p35 = scmp.eq.s32.totalorder %s16, 0
      %p36 = por %p34, %p35
      %p37 = scmp.ne.s32.totalorder %s26, %s29
      %p38 = scmp.eq.s32.totalorder %s21, 1
      %p39 = por %p37, %p38
      %p40 = scmp.ne.s32.totalorder %s29, %s30
      %p41 = scmp.eq.s32.totalorder %s21, 0
      %p42 = por %p40, %p41
      %p43 = scmp.ne.s32.totalorder %s29, %s30
      %p44 = scmp.eq.s32.totalorder %s22, 1
      %p45 = por %p43, %p44
      %p47 = scmp.ne.s32.totalorder %s30, %s46
      %p48 = scmp.eq.s32.totalorder %s22, 0
      %p49 = por %p47, %p48
      %s51 = sadd.s32 %s50, 1
      %p54 = scmp.eq.s32.totalorder %s16, 1
      %p55 = scmp.ne.s32.totalorder %s50, %s52
      %p56 = scmp.eq.s32.totalorder %s16, 0
      %p57 = por %p55, %p56
      %p58 = scmp.ne.s32.totalorder %s50, %s52
      %p59 = scmp.eq.s32.totalorder %s21, 1
      %p60 = por %p58, %p59
      %p61 = scmp.ne.s32.totalorder %s52, %s53
      %p62 = scmp.eq.s32.totalorder %s21, 0
      %p63 = por %p61, %p62
      %p64 = scmp.ne.s32.totalorder %s52, %s53
      %p65 = scmp.eq.s32.totalorder %s22, 1
      %p66 = por %p64, %p65
      %p68 = scmp.ne.s32.totalorder %s53, %s67
      %p69 = scmp.eq.s32.totalorder %s22, 0
      %p70 = por %p68, %p69
      %s72 = sadd.s32 %s71, 1
      %p75 = scmp.eq.s32.totalorder %s16, 1
      %p76 = scmp.ne.s32.totalorder %s71, %s73
      %p77 = scmp.eq.s32.totalorder %s16, 0
      %p78 = por %p76, %p77
      %p79 = scmp.ne.s32.totalorder %s71, %s73
      %p80 = scmp.eq.s32.totalorder %s21, 1
      %p81 = por %p79, %p80
      %p82 = scmp.ne.s32.totalorder %s73, %s74
      %p83 = scmp.eq.s32.totalorder %s21, 0
      %p84 = por %p82, %p83
      %p85 = scmp.ne.s32.totalorder %s73, %s74
      %p86 = scmp.eq.s32.totalorder %s22, 1
      %p87 = por %p85, %p86
      %p89 = scmp.ne.s32.totalorder %s74, %s88
      %p90 = scmp.eq.s32.totalorder %s22, 0
      %p91 = por %p89, %p90
      %s93 = sadd.s32 %s92, 1
      %p96 = scmp.eq.s32.totalorder %s16, 1
      %p97 = scmp.ne.s32.totalorder %s92, %s94
      %p98 = scmp.eq.s32.totalorder %s16, 0
      %p99 = por %p97, %p98
      %p100 = scmp.ne.s32.totalorder %s92, %s94
      %p101 = scmp.eq.s32.totalorder %s21, 1
      %p102 = por %p100, %p101
      %p103 = scmp.ne.s32.totalorder %s94, %s95
      %p104 = scmp.eq.s32.totalorder %s21, 0
      %p105 = por %p103, %p104
      %p106 = scmp.ne.s32.totalorder %s94, %s95
      %p107 = scmp.eq.s32.totalorder %s22, 1
      %p108 = por %p106, %p107
      %p110 = scmp.ne.s32.totalorder %s95, %s109
      %p111 = scmp.eq.s32.totalorder %s22, 0
      %p112 = por %p110, %p111
      %s114 = sadd.s32 %s113, 1
      %p117 = scmp.eq.s32.totalorder %s16, 1
      %p118 = scmp.ne.s32.totalorder %s113, %s115
      %p119 = scmp.eq.s32.totalorder %s16, 0
      %p120 = por %p118, %p119
      %p121 = scmp.ne.s32.totalorder %s113, %s115
      %p122 = scmp.eq.s32.totalorder %s21, 1
      %p123 = por %p121, %p122
      %p124 = scmp.ne.s32.totalorder %s115, %s116
      %p125 = scmp.eq.s32.totalorder %s21, 0
      %p126 = por %p124, %p125
      %p127 = scmp.ne.s32.totalorder %s115, %s116
      %p128 = scmp.eq.s32.totalorder %s22, 1
      %p129 = por %p127, %p128
      %p131 = scmp.ne.s32.totalorder %s116, %s130
      %p132 = scmp.eq.s32.totalorder %s22, 0
      %p133 = por %p131, %p132
      %s135 = sadd.s32 %s134, 1
      %p138 = scmp.eq.s32.totalorder %s16, 1
      %p139 = scmp.ne.s32.totalorder %s134, %s136
      %p140 = scmp.eq.s32.totalorder %s16, 0
      %p141 = por %p139, %p140
      %p142 = scmp.ne.s32.totalorder %s134, %s136
      %p143 = scmp.eq.s32.totalorder %s21, 1
      %p144 = por %p142, %p143
      %p145 = scmp.ne.s32.totalorder %s136, %s137
      %p146 = scmp.eq.s32.totalorder %s21, 0
      %p147 = por %p145, %p146
      %p148 = scmp.ne.s32.totalorder %s136, %s137
      %p149 = scmp.eq.s32.totalorder %s22, 1
      %p150 = por %p148, %p149
      %p152 = scmp.ne.s32.totalorder %s137, %s151
      %p153 = scmp.eq.s32.totalorder %s22, 0
      %p154 = por %p152, %p153
      %s156 = sadd.s32 %s155, 1
      %p159 = scmp.eq.s32.totalorder %s16, 1
      %p160 = scmp.ne.s32.totalorder %s155, %s157
      %p161 = scmp.eq.s32.totalorder %s16, 0
      %p162 = por %p160, %p161
      %p163 = scmp.ne.s32.totalorder %s155, %s157
      %p164 = scmp.eq.s32.totalorder %s21, 1
      %p165 = por %p163, %p164
      %p166 = scmp.ne.s32.totalorder %s157, %s158
      %p167 = scmp.eq.s32.totalorder %s21, 0
      %p168 = por %p166, %p167
      %p169 = scmp.ne.s32.totalorder %s157, %s158
      %p170 = scmp.eq.s32.totalorder %s22, 1
      %p171 = por %p169, %p170
      %p173 = scmp.ne.s32.totalorder %s158, %s172
      %p174 = scmp.eq.s32.totalorder %s22, 0
      %p175 = por %p173, %p174
      %s176 = ssub.s32 %s16, %s23
      %p177 = scmp.eq.s32.totalorder %s176, 0
      %s179 = sadd.s32 %s178, 1
      %s180 = scalar_select %p177, %s178, %s179
      %p183 = pneg %p177
      %p184 = scmp.eq.s32.totalorder %s16, 1
      %p185 = por %p183, %p184
      %p186 = scmp.ne.s32.totalorder %s178, %s181
      %p187 = scmp.eq.s32.totalorder %s16, 0
      %p188 = por %p186, %p187
      %p189 = scmp.ne.s32.totalorder %s178, %s181
      %p190 = scmp.eq.s32.totalorder %s21, 1
      %p191 = por %p189, %p190
      %p192 = scmp.ne.s32.totalorder %s181, %s182
      %p193 = scmp.eq.s32.totalorder %s21, 0
      %p194 = por %p192, %p193
      %p195 = scmp.ne.s32.totalorder %s181, %s182
      %p196 = scmp.eq.s32.totalorder %s22, 1
      %p197 = por %p195, %p196
      %p199 = scmp.ne.s32.totalorder %s182, %s198
      %p200 = scmp.eq.s32.totalorder %s22, 0
      %p201 = por %p199, %p200
      %p202 = scmp.le.s32.totalorder 1, %s16
      %p203 = scmp.lt.s32.totalorder %s16, 3
      %p204 = pnand %p202, %p203
      %p205 = pneg %p204
      // Predicated region
      $region9: #{bottleneck_forward.1} parent=5 // pred_check
        _
      $region10: #{bottleneck_forward.1} parent=5 // pred_check_branch
        %207 = sbr.rel (%p204) target = $region12
      $region11: #{bottleneck_forward.1} parent=5 // pred_region
        %s208 = ssub.s32 %s16, 1
        // Predicated region
        $region13: #{bottleneck_forward.1} parent=11 // pred_check
          %p209 = pneg %p63
        $region14: #{bottleneck_forward.1} parent=11 // pred_check_branch
          %211 = sbr.rel (%p209) target = $region16
        $region15: #{bottleneck_forward.1} parent=11 // pred_region
          _
        $region16: #{bottleneck_forward.1} parent=11 // pred_fallthru
          _
        // Predicated region
        $region17: #{bottleneck_forward.1} parent=11 // pred_check
          %p212 = pneg %p84
        $region18: #{bottleneck_forward.1} parent=11 // pred_check_branch
          %214 = sbr.rel (%p212) target = $region20
        $region19: #{bottleneck_forward.1} parent=11 // pred_region
          _
        $region20: #{bottleneck_forward.1} parent=11 // pred_fallthru
          _
        // Predicated region
        $region21: #{bottleneck_forward.1} parent=11 // pred_check
          %p215 = pneg %p105
        $region22: #{bottleneck_forward.1} parent=11 // pred_check_branch
          %217 = sbr.rel (%p215) target = $region24
        $region23: #{bottleneck_forward.1} parent=11 // pred_region
          _
        $region24: #{bottleneck_forward.1} parent=11 // pred_fallthru
          _
        // Predicated region
        $region25: #{bottleneck_forward.1} parent=11 // pred_check
          %p218 = pneg %p126
        $region26: #{bottleneck_forward.1} parent=11 // pred_check_branch
          %220 = sbr.rel (%p218) target = $region28
        $region27: #{bottleneck_forward.1} parent=11 // pred_region
          _
        $region28: #{bottleneck_forward.1} parent=11 // pred_fallthru
          _
        // Predicated region
        $region29: #{bottleneck_forward.1} parent=11 // pred_check
          %p221 = pneg %p147
        $region30: #{bottleneck_forward.1} parent=11 // pred_check_branch
          %223 = sbr.rel (%p221) target = $region32
        $region31: #{bottleneck_forward.1} parent=11 // pred_region
          _
        $region32: #{bottleneck_forward.1} parent=11 // pred_fallthru
          _
        // Predicated region
        $region33: #{bottleneck_forward.1} parent=11 // pred_check
          %p224 = pneg %p168
        $region34: #{bottleneck_forward.1} parent=11 // pred_check_branch
          %226 = sbr.rel (%p224) target = $region36
        $region35: #{bottleneck_forward.1} parent=11 // pred_region
          _
        $region36: #{bottleneck_forward.1} parent=11 // pred_fallthru
          _
      $region12: #{bottleneck_forward.1} parent=5 // pred_fallthru
        _
      %p227 = scmp.lt.s32.totalorder %s16, 2
      // Predicated region
      $region37: #{bottleneck_forward.1} parent=5 // pred_check
        %p228 = pneg %p227
      $region38: #{bottleneck_forward.1} parent=5 // pred_check_branch
        %230 = sbr.rel (%p228) target = $region40
      $region39: #{bottleneck_forward.1} parent=5 // pred_region
        // Predicated region
        $region41: #{bottleneck_forward.1} parent=39 // pred_check
          %p231 = pneg %p36
        $region42: #{bottleneck_forward.1} parent=39 // pred_check_branch
          %233 = sbr.rel (%p231) target = $region44
        $region43: #{bottleneck_forward.1} parent=39 // pred_region
          %s234 = sand.u32 %s26, 1
          %s235 = scalar_lea.sflag [#allocation4], %s234
          %s236 = sand.u32 %s26, 1
          %s237 = smul.addr %s236, 256
          %s238 = scalar_lea.vmem [#allocation3], %s237
          %240 = vsyncadd %s235, 0
          %s241 = smul.addr %s16, 32
          %s242 = smul.addr %s241, 8
          %s243 = scalar_lea.hbm %s0, %s242
          %s244 = sshll.u32 %s243, 4
          %s245 = int_to_ptr.hbm [resolvable:$true] %s244
          %s246 = sshll.u32 %s238, 4
          %s247 = int_to_ptr.vmem [resolvable:$true] %s246
          %252 = dma.hbm_to_vmem [thread:$0]  %s245, 4096, %s247, %s235, 128, 128, 8
        $region44: #{bottleneck_forward.1} parent=39 // pred_fallthru
          _
      $region40: #{bottleneck_forward.1} parent=5 // pred_fallthru
        _
      %p253 = scmp.le.s32.totalorder 1, %s16
      %p254 = scmp.lt.s32.totalorder %s16, 3
      %p255 = pnand %p253, %p254
      %p256 = pneg %p255
      // Predicated region
      $region45: #{bottleneck_forward.1} parent=5 // pred_check
        _
      $region46: #{bottleneck_forward.1} parent=5 // pred_check_branch
        %258 = sbr.rel (%p255) target = $region48
      $region47: #{bottleneck_forward.1} parent=5 // pred_region
        %s259 = ssub.s32 %s16, 1
        %s260 = sand.u32 %s29, 1
        %s261 = scalar_lea.sflag [#allocation4], %s260
        %s262 = sand.u32 %s29, 1
        %s263 = smul.addr %s262, 256
        %s264 = scalar_lea.vmem [#allocation3], %s263
        // Predicated region
        $region49: #{bottleneck_forward.1} parent=47 // pred_check
          %p265 = pneg %p42
        $region50: #{bottleneck_forward.1} parent=47 // pred_check_branch
          %267 = sbr.rel (%p265) target = $region52
        $region51: #{bottleneck_forward.1} parent=47 // pred_region
          %269 = dma.done %s261, 4096
        $region52: #{bottleneck_forward.1} parent=47 // pred_fallthru
          _
        %s270 = sand.u32 %s29, 1
        %s271 = scalar_lea.sflag [#allocation4], %s270
        %s272 = sand.u32 %s29, 1
        %s273 = smul.addr %s272, 256
        %s274 = scalar_lea.vmem [#allocation3], %s273
        %p275 = pneg %p42
        %p276 = pneg %p39
        %p277 = pneg %p63
        %p278 = pneg %p60
        %p279 = pneg %p84
        %p280 = pneg %p81
        %p281 = pneg %p105
        %p282 = pneg %p102
        %p283 = pneg %p126
        %p284 = pneg %p123
        %p285 = pneg %p147
        %p286 = pneg %p144
        %p287 = pneg %p168
        %p288 = pneg %p165
        %p289 = pneg %p194
        %p290 = pneg %p191
        %p291 = scmp.lt.s32.totalorder %s21, 1
        %s292 = scalar_select %p291, %s21, 1
        %s293 = smul.addr %s292, 32
        %s294 = smul.addr %s293, 8
        %s295 = scalar_lea.vmem %s7, %s294
        %p296 = scmp.lt.s32.totalorder %s21, 1
        %s297 = scalar_select %p296, %s21, 1
        %s298 = smul.addr %s297, 32
        %s299 = smul.addr %s298, 8
        %s300 = scalar_lea.vmem %s7, %s299
        %vm302 = vcmask 64512
        %303 = vst.msk [vmem:[#allocation2] sm:$0xff] %vm302, 0.0
        %304 = vst.msk [vmem:[#allocation2 + $0x8] sm:$0xff] %vm302, 0.0
        %vm305 = vcmask 58368
        %306 = vst.msk [vmem:[#allocation2 + $0x10] sm:$0x3] %vm305, 0.0
        %s307 = scalar_lea.vmem [#allocation2], 408
        %308 = vst.msk [vmem:[%s307] sm:$0xff] %vm302, 0.0
        %309 = vst.msk [vmem:[%s307 + $0x8] sm:$0xff] %vm302, 0.0
        %310 = vst.msk [vmem:[%s307 + $0x10] sm:$0x3] %vm305, 0.0
        %vm311 = vcmask 57344
        %312 = vst.msk [vmem:[#allocation2] sm:$0x1] %vm311, 0.0
        %313 = vst.msk [vmem:[#allocation2 + $0x18] sm:$0x1] %vm311, 0.0
        %314 = vst.msk [vmem:[#allocation2 + $0x30] sm:$0x1] %vm311, 0.0
        %315 = vst.msk [vmem:[#allocation2 + $0x48] sm:$0x1] %vm311, 0.0
        %316 = vst.msk [vmem:[#allocation2 + $0x60] sm:$0x1] %vm311, 0.0
        %317 = vst.msk [vmem:[#allocation2 + $0x78] sm:$0x1] %vm311, 0.0
        %318 = vst.msk [vmem:[#allocation2 + $0x90] sm:$0x1] %vm311, 0.0
        %319 = vst.msk [vmem:[#allocation2 + $0xa8] sm:$0x1] %vm311, 0.0
        %320 = vst.msk [vmem:[#allocation2 + $0xc0] sm:$0x1] %vm311, 0.0
        %321 = vst.msk [vmem:[#allocation2 + $0xd8] sm:$0x1] %vm311, 0.0
        %322 = vst.msk [vmem:[#allocation2 + $0xf0] sm:$0x1] %vm311, 0.0
        %323 = vst.msk [vmem:[#allocation2 + $0x108] sm:$0x1] %vm311, 0.0
        %324 = vst.msk [vmem:[#allocation2 + $0x120] sm:$0x1] %vm311, 0.0
        %325 = vst.msk [vmem:[#allocation2 + $0x138] sm:$0x1] %vm311, 0.0
        %326 = vst.msk [vmem:[#allocation2 + $0x150] sm:$0x1] %vm311, 0.0
        %327 = vst.msk [vmem:[#allocation2 + $0x168] sm:$0x1] %vm311, 0.0
        %328 = vst.msk [vmem:[#allocation2 + $0x180] sm:$0x1] %vm311, 0.0
        %329 = vst.msk [vmem:[#allocation2 + $0x198] sm:$0x1] %vm311, 0.0
        %330 = vst.msk [vmem:[#allocation2 + $0x11] sm:$0x1] %vm311, 0.0
        %331 = vst.msk [vmem:[#allocation2 + $0x29] sm:$0x1] %vm311, 0.0
        %332 = vst.msk [vmem:[#allocation2 + $0x41] sm:$0x1] %vm311, 0.0
        %333 = vst.msk [vmem:[#allocation2 + $0x59] sm:$0x1] %vm311, 0.0
        %334 = vst.msk [vmem:[#allocation2 + $0x71] sm:$0x1] %vm311, 0.0
        %335 = vst.msk [vmem:[#allocation2 + $0x89] sm:$0x1] %vm311, 0.0
        %336 = vst.msk [vmem:[#allocation2 + $0xa1] sm:$0x1] %vm311, 0.0
        %337 = vst.msk [vmem:[#allocation2 + $0xb9] sm:$0x1] %vm311, 0.0
        %338 = vst.msk [vmem:[#allocation2 + $0xd1] sm:$0x1] %vm311, 0.0
        %339 = vst.msk [vmem:[#allocation2 + $0xe9] sm:$0x1] %vm311, 0.0
        %340 = vst.msk [vmem:[#allocation2 + $0x101] sm:$0x1] %vm311, 0.0
        %341 = vst.msk [vmem:[#allocation2 + $0x119] sm:$0x1] %vm311, 0.0
        %342 = vst.msk [vmem:[#allocation2 + $0x131] sm:$0x1] %vm311, 0.0
        %343 = vst.msk [vmem:[#allocation2 + $0x149] sm:$0x1] %vm311, 0.0
        %344 = vst.msk [vmem:[#allocation2 + $0x161] sm:$0x1] %vm311, 0.0
        %345 = vst.msk [vmem:[#allocation2 + $0x179] sm:$0x1] %vm311, 0.0
        %346 = vst.msk [vmem:[#allocation2 + $0x191] sm:$0x1] %vm311, 0.0
        %347 = vst.msk [vmem:[#allocation2 + $0x1a9] sm:$0x1] %vm311, 0.0
        %v348 = vld [vmem:[%s1] sm:$0xf]
        %v349 = vld [vmem:[%s1 + $0x4] sm:$0xf]
        %v350 = vld [vmem:[%s1 + $0x8] sm:$0xf]
        %v351 = vld [vmem:[%s1 + $0xc] sm:$0xf]
        %v352 = vld [vmem:[%s3] sm:$0xf]
        %v353 = vld [vmem:[%s3 + $0x4] sm:$0xf]
        %v354 = vld [vmem:[%s3 + $0x8] sm:$0xf]
        %v355 = vld [vmem:[%s3 + $0xc] sm:$0xf]
        %v356 = vld [vmem:[%s3 + $0x10] sm:$0xf]
        %v357 = vld [vmem:[%s3 + $0x14] sm:$0xf]
        %v358 = vld [vmem:[%s3 + $0x18] sm:$0xf]
        %v359 = vld [vmem:[%s3 + $0x1c] sm:$0xf]
        %v360 = vld [vmem:[%s3 + $0x20] sm:$0xf]
        %v361 = vld [vmem:[%s5] sm:$0xf]
        %v362 = vld [vmem:[%s2] sm:$0x1]
        %v363 = vld [vmem:[%s4] sm:$0x1]
        %v364 = vld [vmem:[%s6] sm:$0x1]
        %v365 = vld [vmem:[%s264] sm:$0xff]
        %v366 = vld [vmem:[%s264 + $0x8] sm:$0xff]
        %v367 = vld [vmem:[%s264 + $0x10] sm:$0xff]
        %v368 = vld [vmem:[%s264 + $0x18] sm:$0xff]
        %v369 = vld [vmem:[%s264 + $0x20] sm:$0xff]
        %v370 = vld [vmem:[%s264 + $0x28] sm:$0xff]
        %v371 = vld [vmem:[%s264 + $0x30] sm:$0xff]
        %v372 = vld [vmem:[%s264 + $0x38] sm:$0xff]
        %v373 = vld [vmem:[%s264 + $0x40] sm:$0xff]
        %v374 = vld [vmem:[%s264 + $0x48] sm:$0xff]
        %v375 = vld [vmem:[%s264 + $0x50] sm:$0xff]
        %v376 = vld [vmem:[%s264 + $0x58] sm:$0xff]
        %v377 = vld [vmem:[%s264 + $0x60] sm:$0xff]
        %v378 = vld [vmem:[%s264 + $0x68] sm:$0xff]
        %v379 = vld [vmem:[%s264 + $0x70] sm:$0xff]
        %v380 = vld [vmem:[%s264 + $0x78] sm:$0xff]
        %v381 = vld [vmem:[%s264 + $0x80] sm:$0xff]
        %v382 = vld [vmem:[%s264 + $0x88] sm:$0xff]
        %v383 = vld [vmem:[%s264 + $0x90] sm:$0xff]
        %v384 = vld [vmem:[%s264 + $0x98] sm:$0xff]
        %v385 = vld [vmem:[%s264 + $0xa0] sm:$0xff]
        %v386 = vld [vmem:[%s264 + $0xa8] sm:$0xff]
        %v387 = vld [vmem:[%s264 + $0xb0] sm:$0xff]
        %v388 = vld [vmem:[%s264 + $0xb8] sm:$0xff]
        %v389 = vld [vmem:[%s264 + $0xc0] sm:$0xff]
        %v390 = vld [vmem:[%s264 + $0xc8] sm:$0xff]
        %v391 = vld [vmem:[%s264 + $0xd0] sm:$0xff]
        %v392 = vld [vmem:[%s264 + $0xd8] sm:$0xff]
        %v393 = vld [vmem:[%s264 + $0xe0] sm:$0xff]
        %v394 = vld [vmem:[%s264 + $0xe8] sm:$0xff]
        %v395 = vld [vmem:[%s264 + $0xf0] sm:$0xff]
        %v396 = vld [vmem:[%s264 + $0xf8] sm:$0xff]
        %v397 = vpack.c.bf16 %v366, %v365
        %v398 = vpack.c.bf16 %v368, %v367
        %v399 = vpack.c.bf16 %v370, %v369
        %v400 = vpack.c.bf16 %v372, %v371
        %v401 = vpack.c.bf16 %v374, %v373
        %v402 = vpack.c.bf16 %v376, %v375
        %v403 = vpack.c.bf16 %v378, %v377
        %v404 = vpack.c.bf16 %v380, %v379
        %v405 = vpack.c.bf16 %v382, %v381
        %v406 = vpack.c.bf16 %v384, %v383
        %v407 = vpack.c.bf16 %v386, %v385
        %v408 = vpack.c.bf16 %v388, %v387
        %v409 = vpack.c.bf16 %v390, %v389
        %v410 = vpack.c.bf16 %v392, %v391
        %v411 = vpack.c.bf16 %v394, %v393
        %v412 = vpack.c.bf16 %v396, %v395
        %v414 = vperm.slane %v362, 0
        %v420 = vunpack.c.l.b16 %v348
        %v421 = vunpack.c.l.b16 %v349
        %v422 = vunpack.c.l.b16 %v350
        %v423 = vunpack.c.l.b16 %v351
        %v424 = vpack.c.b16 %v421, %v420
        %v425 = vpack.c.b16 %v423, %v422
        %vm428 = vcmask 261120
        %v430 = vsel %vm428, %v397, 0
        %v433 = vsel %vm428, %v398, 0
        %v436 = vsel %vm428, %v399, 0
        %v439 = vsel %vm428, %v400, 0
        %v442 = vsel %vm428, %v401, 0
        %v445 = vsel %vm428, %v402, 0
        %v448 = vsel %vm428, %v403, 0
        %v451 = vsel %vm428, %v404, 0
        %v454 = vsel %vm428, %v405, 0
        %v457 = vsel %vm428, %v406, 0
        %v460 = vsel %vm428, %v407, 0
        %v463 = vsel %vm428, %v408, 0
        %v466 = vsel %vm428, %v409, 0
        %v469 = vsel %vm428, %v410, 0
        %v472 = vsel %vm428, %v411, 0
        %v475 = vsel %vm428, %v412, 0
        %477 = vmatpush.bf16.msra.mxu0 0
        %478 = vmatpush.bf16.msra.mxu0 0
        %479 = vmatpush.bf16.msra.mxu0 0
        %480 = vmatpush.bf16.msra.mxu0 0
        %481 = vmatpush.bf16.msra.mxu0 0
        %482 = vmatpush.bf16.msra.mxu0 0
        %483 = vmatpush.bf16.msra.mxu0 %v425
        %484 = vmatpush.bf16.msra.mxu0 %v424
        %485 = vmatmul.bf16.gmra.mxu0 %v430
        %v486 = vpop.f32.mrf.mxu0
        %v487 = vadd.f32 %v414, %v486
        %v488 = vpop.f32.mrf.mxu0
        %v489 = vadd.f32 %v414, %v488
        %490 = vmatmul.bf16.gmra.mxu0 %v433
        %v491 = vpop.f32.mrf.mxu0
        %v492 = vadd.f32 %v414, %v491
        %v493 = vpop.f32.mrf.mxu0
        %v494 = vadd.f32 %v414, %v493
        %495 = vmatmul.bf16.gmra.mxu0 %v436
        %v496 = vpop.f32.mrf.mxu0
        %v497 = vadd.f32 %v414, %v496
        %v498 = vpop.f32.mrf.mxu0
        %v499 = vadd.f32 %v414, %v498
        %500 = vmatmul.bf16.gmra.mxu0 %v439
        %v501 = vpop.f32.mrf.mxu0
        %v502 = vadd.f32 %v414, %v501
        %v503 = vpop.f32.mrf.mxu0
        %v504 = vadd.f32 %v414, %v503
        %505 = vmatmul.bf16.gmra.mxu0 %v442
        %v506 = vpop.f32.mrf.mxu0
        %v507 = vadd.f32 %v414, %v506
        %v508 = vpop.f32.mrf.mxu0
        %v509 = vadd.f32 %v414, %v508
        %510 = vmatmul.bf16.gmra.mxu0 %v445
        %v511 = vpop.f32.mrf.mxu0
        %v512 = vadd.f32 %v414, %v511
        %v513 = vpop.f32.mrf.mxu0
        %v514 = vadd.f32 %v414, %v513
        %515 = vmatmul.bf16.gmra.mxu0 %v448
        %v516 = vpop.f32.mrf.mxu0
        %v517 = vadd.f32 %v414, %v516
        %v518 = vpop.f32.mrf.mxu0
        %v519 = vadd.f32 %v414, %v518
        %520 = vmatmul.bf16.gmra.mxu0 %v451
        %v521 = vpop.f32.mrf.mxu0
        %v522 = vadd.f32 %v414, %v521
        %v523 = vpop.f32.mrf.mxu0
        %v524 = vadd.f32 %v414, %v523
        %525 = vmatmul.bf16.gmra.mxu0 %v454
        %v526 = vpop.f32.mrf.mxu0
        %v527 = vadd.f32 %v414, %v526
        %v528 = vpop.f32.mrf.mxu0
        %v529 = vadd.f32 %v414, %v528
        %530 = vmatmul.bf16.gmra.mxu0 %v457
        %v531 = vpop.f32.mrf.mxu0
        %v532 = vadd.f32 %v414, %v531
        %v533 = vpop.f32.mrf.mxu0
        %v534 = vadd.f32 %v414, %v533
        %535 = vmatmul.bf16.gmra.mxu0 %v460
        %v536 = vpop.f32.mrf.mxu0
        %v537 = vadd.f32 %v414, %v536
        %v538 = vpop.f32.mrf.mxu0
        %v539 = vadd.f32 %v414, %v538
        %540 = vmatmul.bf16.gmra.mxu0 %v463
        %v541 = vpop.f32.mrf.mxu0
        %v542 = vadd.f32 %v414, %v541
        %v543 = vpop.f32.mrf.mxu0
        %v544 = vadd.f32 %v414, %v543
        %545 = vmatmul.bf16.gmra.mxu0 %v466
        %v546 = vpop.f32.mrf.mxu0
        %v547 = vadd.f32 %v414, %v546
        %v548 = vpop.f32.mrf.mxu0
        %v549 = vadd.f32 %v414, %v548
        %550 = vmatmul.bf16.gmra.mxu0 %v469
        %v551 = vpop.f32.mrf.mxu0
        %v552 = vadd.f32 %v414, %v551
        %v553 = vpop.f32.mrf.mxu0
        %v554 = vadd.f32 %v414, %v553
        %555 = vmatmul.bf16.gmra.mxu0 %v472
        %v556 = vpop.f32.mrf.mxu0
        %v557 = vadd.f32 %v414, %v556
        %v558 = vpop.f32.mrf.mxu0
        %v559 = vadd.f32 %v414, %v558
        %560 = vmatmul.bf16.gmra.mxu0 %v475
        %v561 = vpop.f32.mrf.mxu0
        %v562 = vadd.f32 %v414, %v561
        %v563 = vpop.f32.mrf.mxu0
        %v564 = vadd.f32 %v414, %v563
        %565 = vdwg.mxu0
        %v566 = vmax.f32 %v487, 0.0
        %v567 = vmax.f32 %v489, 0.0
        %v568 = vmax.f32 %v492, 0.0
        %v569 = vmax.f32 %v494, 0.0
        %v570 = vmax.f32 %v497, 0.0
        %v571 = vmax.f32 %v499, 0.0
        %v572 = vmax.f32 %v502, 0.0
        %v573 = vmax.f32 %v504, 0.0
        %v574 = vmax.f32 %v507, 0.0
        %v575 = vmax.f32 %v509, 0.0
        %v576 = vmax.f32 %v512, 0.0
        %v577 = vmax.f32 %v514, 0.0
        %v578 = vmax.f32 %v517, 0.0
        %v579 = vmax.f32 %v519, 0.0
        %v580 = vmax.f32 %v522, 0.0
        %v581 = vmax.f32 %v524, 0.0
        %v582 = vmax.f32 %v527, 0.0
        %v583 = vmax.f32 %v529, 0.0
        %v584 = vmax.f32 %v532, 0.0
        %v585 = vmax.f32 %v534, 0.0
        %v586 = vmax.f32 %v537, 0.0
        %v587 = vmax.f32 %v539, 0.0
        %v588 = vmax.f32 %v542, 0.0
        %v589 = vmax.f32 %v544, 0.0
        %v590 = vmax.f32 %v547, 0.0
        %v591 = vmax.f32 %v549, 0.0
        %v592 = vmax.f32 %v552, 0.0
        %v593 = vmax.f32 %v554, 0.0
        %v594 = vmax.f32 %v557, 0.0
        %v595 = vmax.f32 %v559, 0.0
        %v596 = vmax.f32 %v562, 0.0
        %v597 = vmax.f32 %v564, 0.0
        %s598 = scalar_lea.vmem [#allocation2], 24
        %599 = vst.msk [vmem:[%s598 + $0x1] sm:$0xff] %vm302, %v566
        %600 = vst.msk [vmem:[%s598 + $0x9] sm:$0xff] %vm302, %v567
        %601 = vst.msk [vmem:[%s598 + $0x19] sm:$0xff] %vm302, %v568
        %602 = vst.msk [vmem:[%s598 + $0x21] sm:$0xff] %vm302, %v569
        %603 = vst.msk [vmem:[%s598 + $0x31] sm:$0xff] %vm302, %v570
        %604 = vst.msk [vmem:[%s598 + $0x39] sm:$0xff] %vm302, %v571
        %605 = vst.msk [vmem:[%s598 + $0x49] sm:$0xff] %vm302, %v572
        %606 = vst.msk [vmem:[%s598 + $0x51] sm:$0xff] %vm302, %v573
        %607 = vst.msk [vmem:[%s598 + $0x61] sm:$0xff] %vm302, %v574
        %608 = vst.msk [vmem:[%s598 + $0x69] sm:$0xff] %vm302, %v575
        %609 = vst.msk [vmem:[%s598 + $0x79] sm:$0xff] %vm302, %v576
        %610 = vst.msk [vmem:[%s598 + $0x81] sm:$0xff] %vm302, %v577
        %611 = vst.msk [vmem:[%s598 + $0x91] sm:$0xff] %vm302, %v578
        %612 = vst.msk [vmem:[%s598 + $0x99] sm:$0xff] %vm302, %v579
        %613 = vst.msk [vmem:[%s598 + $0xa9] sm:$0xff] %vm302, %v580
        %614 = vst.msk [vmem:[%s598 + $0xb1] sm:$0xff] %vm302, %v581
        %615 = vst.msk [vmem:[%s598 + $0xc1] sm:$0xff] %vm302, %v582
        %616 = vst.msk [vmem:[%s598 + $0xc9] sm:$0xff] %vm302, %v583
        %617 = vst.msk [vmem:[%s598 + $0xd9] sm:$0xff] %vm302, %v584
        %618 = vst.msk [vmem:[%s598 + $0xe1] sm:$0xff] %vm302, %v585
        %619 = vst.msk [vmem:[%s598 + $0xf1] sm:$0xff] %vm302, %v586
        %620 = vst.msk [vmem:[%s598 + $0xf9] sm:$0xff] %vm302, %v587
        %621 = vst.msk [vmem:[%s598 + $0x109] sm:$0xff] %vm302, %v588
        %622 = vst.msk [vmem:[%s598 + $0x111] sm:$0xff] %vm302, %v589
        %623 = vst.msk [vmem:[%s598 + $0x121] sm:$0xff] %vm302, %v590
        %624 = vst.msk [vmem:[%s598 + $0x129] sm:$0xff] %vm302, %v591
        %625 = vst.msk [vmem:[%s598 + $0x139] sm:$0xff] %vm302, %v592
        %626 = vst.msk [vmem:[%s598 + $0x141] sm:$0xff] %vm302, %v593
        %627 = vst.msk [vmem:[%s598 + $0x151] sm:$0xff] %vm302, %v594
        %628 = vst.msk [vmem:[%s598 + $0x159] sm:$0xff] %vm302, %v595
        %629 = vst.msk [vmem:[%s598 + $0x169] sm:$0xff] %vm302, %v596
        %630 = vst.msk [vmem:[%s598 + $0x171] sm:$0xff] %vm302, %v597
        %v631 = vld [vmem:[#allocation2] sm:$0xff]
        %v632 = vld [vmem:[#allocation2 + $0x8] sm:$0xff]
        %v633 = vld [vmem:[#allocation2 + $0x18] sm:$0xff]
        %v634 = vld [vmem:[#allocation2 + $0x20] sm:$0xff]
        %v635 = vld [vmem:[#allocation2 + $0x30] sm:$0xff]
        %v636 = vld [vmem:[#allocation2 + $0x38] sm:$0xff]
        %v637 = vld [vmem:[#allocation2 + $0x48] sm:$0xff]
        %v638 = vld [vmem:[#allocation2 + $0x50] sm:$0xff]
        %v639 = vld [vmem:[#allocation2 + $0x60] sm:$0xff]
        %v640 = vld [vmem:[#allocation2 + $0x68] sm:$0xff]
        %v641 = vld [vmem:[#allocation2 + $0x78] sm:$0xff]
        %v642 = vld [vmem:[#allocation2 + $0x80] sm:$0xff]
        %v643 = vld [vmem:[#allocation2 + $0x90] sm:$0xff]
        %v644 = vld [vmem:[#allocation2 + $0x98] sm:$0xff]
        %v645 = vld [vmem:[#allocation2 + $0xa8] sm:$0xff]
        %v646 = vld [vmem:[#allocation2 + $0xb0] sm:$0xff]
        %v647 = vld [vmem:[#allocation2 + $0xc0] sm:$0xff]
        %v648 = vld [vmem:[#allocation2 + $0xc8] sm:$0xff]
        %v649 = vld [vmem:[#allocation2 + $0xd8] sm:$0xff]
        %v650 = vld [vmem:[#allocation2 + $0xe0] sm:$0xff]
        %v651 = vld [vmem:[#allocation2 + $0xf0] sm:$0xff]
        %v652 = vld [vmem:[#allocation2 + $0xf8] sm:$0xff]
        %v653 = vld [vmem:[#allocation2 + $0x108] sm:$0xff]
        %v654 = vld [vmem:[#allocation2 + $0x110] sm:$0xff]
        %v655 = vld [vmem:[#allocation2 + $0x120] sm:$0xff]
        %v656 = vld [vmem:[#allocation2 + $0x128] sm:$0xff]
        %v657 = vld [vmem:[#allocation2 + $0x138] sm:$0xff]
        %v658 = vld [vmem:[#allocation2 + $0x140] sm:$0xff]
        %v659 = vld [vmem:[#allocation2 + $0x150] sm:$0xff]
        %v660 = vld [vmem:[#allocation2 + $0x158] sm:$0xff]
        %v661 = vld [vmem:[#allocation2 + $0x168] sm:$0xff]
        %v662 = vld [vmem:[#allocation2 + $0x170] sm:$0xff]
        %v663 = vpack.c.bf16 %v631, %v631
        %v664 = vpack.c.bf16 %v632, %v632
        %v665 = vpack.c.bf16 %v633, %v633
        %v666 = vpack.c.bf16 %v634, %v634
        %v667 = vpack.c.bf16 %v635, %v635
        %v668 = vpack.c.bf16 %v636, %v636
        %v669 = vpack.c.bf16 %v637, %v637
        %v670 = vpack.c.bf16 %v638, %v638
        %v671 = vpack.c.bf16 %v639, %v639
        %v672 = vpack.c.bf16 %v640, %v640
        %v673 = vpack.c.bf16 %v641, %v641
        %v674 = vpack.c.bf16 %v642, %v642
        %v675 = vpack.c.bf16 %v643, %v643
        %v676 = vpack.c.bf16 %v644, %v644
        %v677 = vpack.c.bf16 %v645, %v645
        %v678 = vpack.c.bf16 %v646, %v646
        %v679 = vpack.c.bf16 %v647, %v647
        %v680 = vpack.c.bf16 %v648, %v648
        %v681 = vpack.c.bf16 %v649, %v649
        %v682 = vpack.c.bf16 %v650, %v650
        %v683 = vpack.c.bf16 %v651, %v651
        %v684 = vpack.c.bf16 %v652, %v652
        %v685 = vpack.c.bf16 %v653, %v653
        %v686 = vpack.c.bf16 %v654, %v654
        %v687 = vpack.c.bf16 %v655, %v655
        %v688 = vpack.c.bf16 %v656, %v656
        %v689 = vpack.c.bf16 %v657, %v657
        %v690 = vpack.c.bf16 %v658, %v658
        %v691 = vpack.c.bf16 %v659, %v659
        %v692 = vpack.c.bf16 %v660, %v660
        %v693 = vpack.c.bf16 %v661, %v661
        %v694 = vpack.c.bf16 %v662, %v662
        %v695 = vld [vmem:[#allocation2 + $0x1] sm:$0xff]
        %v696 = vld [vmem:[#allocation2 + $0x9] sm:$0xff]
        %v697 = vld [vmem:[#allocation2 + $0x19] sm:$0xff]
        %v698 = vld [vmem:[#allocation2 + $0x21] sm:$0xff]
        %v699 = vld [vmem:[#allocation2 + $0x31] sm:$0xff]
        %v700 = vld [vmem:[#allocation2 + $0x39] sm:$0xff]
        %v701 = vld [vmem:[#allocation2 + $0x49] sm:$0xff]
        %v702 = vld [vmem:[#allocation2 + $0x51] sm:$0xff]
        %v703 = vld [vmem:[#allocation2 + $0x61] sm:$0xff]
        %v704 = vld [vmem:[#allocation2 + $0x69] sm:$0xff]
        %v705 = vld [vmem:[#allocation2 + $0x79] sm:$0xff]
        %v706 = vld [vmem:[#allocation2 + $0x81] sm:$0xff]
        %v707 = vld [vmem:[#allocation2 + $0x91] sm:$0xff]
        %v708 = vld [vmem:[#allocation2 + $0x99] sm:$0xff]
        %v709 = vld [vmem:[#allocation2 + $0xa9] sm:$0xff]
        %v710 = vld [vmem:[#allocation2 + $0xb1] sm:$0xff]
        %v711 = vld [vmem:[#allocation2 + $0xc1] sm:$0xff]
        %v712 = vld [vmem:[#allocation2 + $0xc9] sm:$0xff]
        %v713 = vld [vmem:[#allocation2 + $0xd9] sm:$0xff]
        %v714 = vld [vmem:[#allocation2 + $0xe1] sm:$0xff]
        %v715 = vld [vmem:[#allocation2 + $0xf1] sm:$0xff]
        %v716 = vld [vmem:[#allocation2 + $0xf9] sm:$0xff]
        %v717 = vld [vmem:[#allocation2 + $0x109] sm:$0xff]
        %v718 = vld [vmem:[#allocation2 + $0x111] sm:$0xff]
        %v719 = vld [vmem:[#allocation2 + $0x121] sm:$0xff]
        %v720 = vld [vmem:[#allocation2 + $0x129] sm:$0xff]
        %v721 = vld [vmem:[#allocation2 + $0x139] sm:$0xff]
        %v722 = vld [vmem:[#allocation2 + $0x141] sm:$0xff]
        %v723 = vld [vmem:[#allocation2 + $0x151] sm:$0xff]
        %v724 = vld [vmem:[#allocation2 + $0x159] sm:$0xff]
        %v725 = vld [vmem:[#allocation2 + $0x169] sm:$0xff]
        %v726 = vld [vmem:[#allocation2 + $0x171] sm:$0xff]
        %v727 = vpack.c.bf16 %v695, %v695
        %v728 = vpack.c.bf16 %v696, %v696
        %v729 = vpack.c.bf16 %v697, %v697
        %v730 = vpack.c.bf16 %v698, %v698
        %v731 = vpack.c.bf16 %v699, %v699
        %v732 = vpack.c.bf16 %v700, %v700
        %v733 = vpack.c.bf16 %v701, %v701
        %v734 = vpack.c.bf16 %v702, %v702
        %v735 = vpack.c.bf16 %v703, %v703
        %v736 = vpack.c.bf16 %v704, %v704
        %v737 = vpack.c.bf16 %v705, %v705
        %v738 = vpack.c.bf16 %v706, %v706
        %v739 = vpack.c.bf16 %v707, %v707
        %v740 = vpack.c.bf16 %v708, %v708
        %v741 = vpack.c.bf16 %v709, %v709
        %v742 = vpack.c.bf16 %v710, %v710
        %v743 = vpack.c.bf16 %v711, %v711
        %v744 = vpack.c.bf16 %v712, %v712
        %v745 = vpack.c.bf16 %v713, %v713
        %v746 = vpack.c.bf16 %v714, %v714
        %v747 = vpack.c.bf16 %v715, %v715
        %v748 = vpack.c.bf16 %v716, %v716
        %v749 = vpack.c.bf16 %v717, %v717
        %v750 = vpack.c.bf16 %v718, %v718
        %v751 = vpack.c.bf16 %v719, %v719
        %v752 = vpack.c.bf16 %v720, %v720
        %v753 = vpack.c.bf16 %v721, %v721
        %v754 = vpack.c.bf16 %v722, %v722
        %v755 = vpack.c.bf16 %v723, %v723
        %v756 = vpack.c.bf16 %v724, %v724
        %v757 = vpack.c.bf16 %v725, %v725
        %v758 = vpack.c.bf16 %v726, %v726
        %v759 = vld [vmem:[#allocation2 + $0x2] sm:$0xff]
        %v760 = vld [vmem:[#allocation2 + $0xa] sm:$0xff]
        %v761 = vld [vmem:[#allocation2 + $0x1a] sm:$0xff]
        %v762 = vld [vmem:[#allocation2 + $0x22] sm:$0xff]
        %v763 = vld [vmem:[#allocation2 + $0x32] sm:$0xff]
        %v764 = vld [vmem:[#allocation2 + $0x3a] sm:$0xff]
        %v765 = vld [vmem:[#allocation2 + $0x4a] sm:$0xff]
        %v766 = vld [vmem:[#allocation2 + $0x52] sm:$0xff]
        %v767 = vld [vmem:[#allocation2 + $0x62] sm:$0xff]
        %v768 = vld [vmem:[#allocation2 + $0x6a] sm:$0xff]
        %v769 = vld [vmem:[#allocation2 + $0x7a] sm:$0xff]
        %v770 = vld [vmem:[#allocation2 + $0x82] sm:$0xff]
        %v771 = vld [vmem:[#allocation2 + $0x92] sm:$0xff]
        %v772 = vld [vmem:[#allocation2 + $0x9a] sm:$0xff]
        %v773 = vld [vmem:[#allocation2 + $0xaa] sm:$0xff]
        %v774 = vld [vmem:[#allocation2 + $0xb2] sm:$0xff]
        %v775 = vld [vmem:[#allocation2 + $0xc2] sm:$0xff]
        %v776 = vld [vmem:[#allocation2 + $0xca] sm:$0xff]
        %v777 = vld [vmem:[#allocation2 + $0xda] sm:$0xff]
        %v778 = vld [vmem:[#allocation2 + $0xe2] sm:$0xff]
        %v779 = vld [vmem:[#allocation2 + $0xf2] sm:$0xff]
        %v780 = vld [vmem:[#allocation2 + $0xfa] sm:$0xff]
        %v781 = vld [vmem:[#allocation2 + $0x10a] sm:$0xff]
        %v782 = vld [vmem:[#allocation2 + $0x112] sm:$0xff]
        %v783 = vld [vmem:[#allocation2 + $0x122] sm:$0xff]
        %v784 = vld [vmem:[#allocation2 + $0x12a] sm:$0xff]
        %v785 = vld [vmem:[#allocation2 + $0x13a] sm:$0xff]
        %v786 = vld [vmem:[#allocation2 + $0x142] sm:$0xff]
        %v787 = vld [vmem:[#allocation2 + $0x152] sm:$0xff]
        %v788 = vld [vmem:[#allocation2 + $0x15a] sm:$0xff]
        %v789 = vld [vmem:[#allocation2 + $0x16a] sm:$0xff]
        %v790 = vld [vmem:[#allocation2 + $0x172] sm:$0xff]
        %v791 = vpack.c.bf16 %v759, %v759
        %v792 = vpack.c.bf16 %v760, %v760
        %v793 = vpack.c.bf16 %v761, %v761
        %v794 = vpack.c.bf16 %v762, %v762
        %v795 = vpack.c.bf16 %v763, %v763
        %v796 = vpack.c.bf16 %v764, %v764
        %v797 = vpack.c.bf16 %v765, %v765
        %v798 = vpack.c.bf16 %v766, %v766
        %v799 = vpack.c.bf16 %v767, %v767
        %v800 = vpack.c.bf16 %v768, %v768
        %v801 = vpack.c.bf16 %v769, %v769
        %v802 = vpack.c.bf16 %v770, %v770
        %v803 = vpack.c.bf16 %v771, %v771
        %v804 = vpack.c.bf16 %v772, %v772
        %v805 = vpack.c.bf16 %v773, %v773
        %v806 = vpack.c.bf16 %v774, %v774
        %v807 = vpack.c.bf16 %v775, %v775
        %v808 = vpack.c.bf16 %v776, %v776
        %v809 = vpack.c.bf16 %v777, %v777
        %v810 = vpack.c.bf16 %v778, %v778
        %v811 = vpack.c.bf16 %v779, %v779
        %v812 = vpack.c.bf16 %v780, %v780
        %v813 = vpack.c.bf16 %v781, %v781
        %v814 = vpack.c.bf16 %v782, %v782
        %v815 = vpack.c.bf16 %v783, %v783
        %v816 = vpack.c.bf16 %v784, %v784
        %v817 = vpack.c.bf16 %v785, %v785
        %v818 = vpack.c.bf16 %v786, %v786
        %v819 = vpack.c.bf16 %v787, %v787
        %v820 = vpack.c.bf16 %v788, %v788
        %v821 = vpack.c.bf16 %v789, %v789
        %v822 = vpack.c.bf16 %v790, %v790
        %v823 = vld [vmem:[%s598] sm:$0xff]
        %v824 = vld [vmem:[%s598 + $0x8] sm:$0xff]
        %v825 = vld [vmem:[%s598 + $0x18] sm:$0xff]
        %v826 = vld [vmem:[%s598 + $0x20] sm:$0xff]
        %v827 = vld [vmem:[%s598 + $0x30] sm:$0xff]
        %v828 = vld [vmem:[%s598 + $0x38] sm:$0xff]
        %v829 = vld [vmem:[%s598 + $0x48] sm:$0xff]
        %v830 = vld [vmem:[%s598 + $0x50] sm:$0xff]
        %v831 = vld [vmem:[%s598 + $0x60] sm:$0xff]
        %v832 = vld [vmem:[%s598 + $0x68] sm:$0xff]
        %v833 = vld [vmem:[%s598 + $0x78] sm:$0xff]
        %v834 = vld [vmem:[%s598 + $0x80] sm:$0xff]
        %v835 = vld [vmem:[%s598 + $0x90] sm:$0xff]
        %v836 = vld [vmem:[%s598 + $0x98] sm:$0xff]
        %v837 = vld [vmem:[%s598 + $0xa8] sm:$0xff]
        %v838 = vld [vmem:[%s598 + $0xb0] sm:$0xff]
        %v839 = vld [vmem:[%s598 + $0xc0] sm:$0xff]
        %v840 = vld [vmem:[%s598 + $0xc8] sm:$0xff]
        %v841 = vld [vmem:[%s598 + $0xd8] sm:$0xff]
        %v842 = vld [vmem:[%s598 + $0xe0] sm:$0xff]
        %v843 = vld [vmem:[%s598 + $0xf0] sm:$0xff]
        %v844 = vld [vmem:[%s598 + $0xf8] sm:$0xff]
        %v845 = vld [vmem:[%s598 + $0x108] sm:$0xff]
        %v846 = vld [vmem:[%s598 + $0x110] sm:$0xff]
        %v847 = vld [vmem:[%s598 + $0x120] sm:$0xff]
        %v848 = vld [vmem:[%s598 + $0x128] sm:$0xff]
        %v849 = vld [vmem:[%s598 + $0x138] sm:$0xff]
        %v850 = vld [vmem:[%s598 + $0x140] sm:$0xff]
        %v851 = vld [vmem:[%s598 + $0x150] sm:$0xff]
        %v852 = vld [vmem:[%s598 + $0x158] sm:$0xff]
        %v853 = vld [vmem:[%s598 + $0x168] sm:$0xff]
        %v854 = vld [vmem:[%s598 + $0x170] sm:$0xff]
        %v855 = vpack.c.bf16 %v823, %v823
        %v856 = vpack.c.bf16 %v824, %v824
        %v857 = vpack.c.bf16 %v825, %v825
        %v858 = vpack.c.bf16 %v826, %v826
        %v859 = vpack.c.bf16 %v827, %v827
        %v860 = vpack.c.bf16 %v828, %v828
        %v861 = vpack.c.bf16 %v829, %v829
        %v862 = vpack.c.bf16 %v830, %v830
        %v863 = vpack.c.bf16 %v831, %v831
        %v864 = vpack.c.bf16 %v832, %v832
        %v865 = vpack.c.bf16 %v833, %v833
        %v866 = vpack.c.bf16 %v834, %v834
        %v867 = vpack.c.bf16 %v835, %v835
        %v868 = vpack.c.bf16 %v836, %v836
        %v869 = vpack.c.bf16 %v837, %v837
        %v870 = vpack.c.bf16 %v838, %v838
        %v871 = vpack.c.bf16 %v839, %v839
        %v872 = vpack.c.bf16 %v840, %v840
        %v873 = vpack.c.bf16 %v841, %v841
        %v874 = vpack.c.bf16 %v842, %v842
        %v875 = vpack.c.bf16 %v843, %v843
        %v876 = vpack.c.bf16 %v844, %v844
        %v877 = vpack.c.bf16 %v845, %v845
        %v878 = vpack.c.bf16 %v846, %v846
        %v879 = vpack.c.bf16 %v847, %v847
        %v880 = vpack.c.bf16 %v848, %v848
        %v881 = vpack.c.bf16 %v849, %v849
        %v882 = vpack.c.bf16 %v850, %v850
        %v883 = vpack.c.bf16 %v851, %v851
        %v884 = vpack.c.bf16 %v852, %v852
        %v885 = vpack.c.bf16 %v853, %v853
        %v886 = vpack.c.bf16 %v854, %v854
        %v887 = vld [vmem:[%s598 + $0x1] sm:$0xff]
        %v888 = vld [vmem:[%s598 + $0x9] sm:$0xff]
        %v889 = vld [vmem:[%s598 + $0x19] sm:$0xff]
        %v890 = vld [vmem:[%s598 + $0x21] sm:$0xff]
        %v891 = vld [vmem:[%s598 + $0x31] sm:$0xff]
        %v892 = vld [vmem:[%s598 + $0x39] sm:$0xff]
        %v893 = vld [vmem:[%s598 + $0x49] sm:$0xff]
        %v894 = vld [vmem:[%s598 + $0x51] sm:$0xff]
        %v895 = vld [vmem:[%s598 + $0x61] sm:$0xff]
        %v896 = vld [vmem:[%s598 + $0x69] sm:$0xff]
        %v897 = vld [vmem:[%s598 + $0x79] sm:$0xff]
        %v898 = vld [vmem:[%s598 + $0x81] sm:$0xff]
        %v899 = vld [vmem:[%s598 + $0x91] sm:$0xff]
        %v900 = vld [vmem:[%s598 + $0x99] sm:$0xff]
        %v901 = vld [vmem:[%s598 + $0xa9] sm:$0xff]
        %v902 = vld [vmem:[%s598 + $0xb1] sm:$0xff]
        %v903 = vld [vmem:[%s598 + $0xc1] sm:$0xff]
        %v904 = vld [vmem:[%s598 + $0xc9] sm:$0xff]
        %v905 = vld [vmem:[%s598 + $0xd9] sm:$0xff]
        %v906 = vld [vmem:[%s598 + $0xe1] sm:$0xff]
        %v907 = vld [vmem:[%s598 + $0xf1] sm:$0xff]
        %v908 = vld [vmem:[%s598 + $0xf9] sm:$0xff]
        %v909 = vld [vmem:[%s598 + $0x109] sm:$0xff]
        %v910 = vld [vmem:[%s598 + $0x111] sm:$0xff]
        %v911 = vld [vmem:[%s598 + $0x121] sm:$0xff]
        %v912 = vld [vmem:[%s598 + $0x129] sm:$0xff]
        %v913 = vld [vmem:[%s598 + $0x139] sm:$0xff]
        %v914 = vld [vmem:[%s598 + $0x141] sm:$0xff]
        %v915 = vld [vmem:[%s598 + $0x151] sm:$0xff]
        %v916 = vld [vmem:[%s598 + $0x159] sm:$0xff]
        %v917 = vld [vmem:[%s598 + $0x169] sm:$0xff]
        %v918 = vld [vmem:[%s598 + $0x171] sm:$0xff]
        %v919 = vpack.c.bf16 %v887, %v887
        %v920 = vpack.c.bf16 %v888, %v888
        %v921 = vpack.c.bf16 %v889, %v889
        %v922 = vpack.c.bf16 %v890, %v890
        %v923 = vpack.c.bf16 %v891, %v891
        %v924 = vpack.c.bf16 %v892, %v892
        %v925 = vpack.c.bf16 %v893, %v893
        %v926 = vpack.c.bf16 %v894, %v894
        %v927 = vpack.c.bf16 %v895, %v895
        %v928 = vpack.c.bf16 %v896, %v896
        %v929 = vpack.c.bf16 %v897, %v897
        %v930 = vpack.c.bf16 %v898, %v898
        %v931 = vpack.c.bf16 %v899, %v899
        %v932 = vpack.c.bf16 %v900, %v900
        %v933 = vpack.c.bf16 %v901, %v901
        %v934 = vpack.c.bf16 %v902, %v902
        %v935 = vpack.c.bf16 %v903, %v903
        %v936 = vpack.c.bf16 %v904, %v904
        %v937 = vpack.c.bf16 %v905, %v905
        %v938 = vpack.c.bf16 %v906, %v906
        %v939 = vpack.c.bf16 %v907, %v907
        %v940 = vpack.c.bf16 %v908, %v908
        %v941 = vpack.c.bf16 %v909, %v909
        %v942 = vpack.c.bf16 %v910, %v910
        %v943 = vpack.c.bf16 %v911, %v911
        %v944 = vpack.c.bf16 %v912, %v912
        %v945 = vpack.c.bf16 %v913, %v913
        %v946 = vpack.c.bf16 %v914, %v914
        %v947 = vpack.c.bf16 %v915, %v915
        %v948 = vpack.c.bf16 %v916, %v916
        %v949 = vpack.c.bf16 %v917, %v917
        %v950 = vpack.c.bf16 %v918, %v918
        %v951 = vld [vmem:[%s598 + $0x2] sm:$0xff]
        %v952 = vld [vmem:[%s598 + $0xa] sm:$0xff]
        %v953 = vld [vmem:[%s598 + $0x1a] sm:$0xff]
        %v954 = vld [vmem:[%s598 + $0x22] sm:$0xff]
        %v955 = vld [vmem:[%s598 + $0x32] sm:$0xff]
        %v956 = vld [vmem:[%s598 + $0x3a] sm:$0xff]
        %v957 = vld [vmem:[%s598 + $0x4a] sm:$0xff]
        %v958 = vld [vmem:[%s598 + $0x52] sm:$0xff]
        %v959 = vld [vmem:[%s598 + $0x62] sm:$0xff]
        %v960 = vld [vmem:[%s598 + $0x6a] sm:$0xff]
        %v961 = vld [vmem:[%s598 + $0x7a] sm:$0xff]
        %v962 = vld [vmem:[%s598 + $0x82] sm:$0xff]
        %v963 = vld [vmem:[%s598 + $0x92] sm:$0xff]
        %v964 = vld [vmem:[%s598 + $0x9a] sm:$0xff]
        %v965 = vld [vmem:[%s598 + $0xaa] sm:$0xff]
        %v966 = vld [vmem:[%s598 + $0xb2] sm:$0xff]
        %v967 = vld [vmem:[%s598 + $0xc2] sm:$0xff]
        %v968 = vld [vmem:[%s598 + $0xca] sm:$0xff]
        %v969 = vld [vmem:[%s598 + $0xda] sm:$0xff]
        %v970 = vld [vmem:[%s598 + $0xe2] sm:$0xff]
        %v971 = vld [vmem:[%s598 + $0xf2] sm:$0xff]
        %v972 = vld [vmem:[%s598 + $0xfa] sm:$0xff]
        %v973 = vld [vmem:[%s598 + $0x10a] sm:$0xff]
        %v974 = vld [vmem:[%s598 + $0x112] sm:$0xff]
        %v975 = vld [vmem:[%s598 + $0x122] sm:$0xff]
        %v976 = vld [vmem:[%s598 + $0x12a] sm:$0xff]
        %v977 = vld [vmem:[%s598 + $0x13a] sm:$0xff]
        %v978 = vld [vmem:[%s598 + $0x142] sm:$0xff]
        %v979 = vld [vmem:[%s598 + $0x152] sm:$0xff]
        %v980 = vld [vmem:[%s598 + $0x15a] sm:$0xff]
        %v981 = vld [vmem:[%s598 + $0x16a] sm:$0xff]
        %v982 = vld [vmem:[%s598 + $0x172] sm:$0xff]
        %v983 = vpack.c.bf16 %v951, %v951
        %v984 = vpack.c.bf16 %v952, %v952
        %v985 = vpack.c.bf16 %v953, %v953
        %v986 = vpack.c.bf16 %v954, %v954
        %v987 = vpack.c.bf16 %v955, %v955
        %v988 = vpack.c.bf16 %v956, %v956
        %v989 = vpack.c.bf16 %v957, %v957
        %v990 = vpack.c.bf16 %v958, %v958
        %v991 = vpack.c.bf16 %v959, %v959
        %v992 = vpack.c.bf16 %v960, %v960
        %v993 = vpack.c.bf16 %v961, %v961
        %v994 = vpack.c.bf16 %v962, %v962
        %v995 = vpack.c.bf16 %v963, %v963
        %v996 = vpack.c.bf16 %v964, %v964
        %v997 = vpack.c.bf16 %v965, %v965
        %v998 = vpack.c.bf16 %v966, %v966
        %v999 = vpack.c.bf16 %v967, %v967
        %v1000 = vpack.c.bf16 %v968, %v968
        %v1001 = vpack.c.bf16 %v969, %v969
        %v1002 = vpack.c.bf16 %v970, %v970
        %v1003 = vpack.c.bf16 %v971, %v971
        %v1004 = vpack.c.bf16 %v972, %v972
        %v1005 = vpack.c.bf16 %v973, %v973
        %v1006 = vpack.c.bf16 %v974, %v974
        %v1007 = vpack.c.bf16 %v975, %v975
        %v1008 = vpack.c.bf16 %v976, %v976
        %v1009 = vpack.c.bf16 %v977, %v977
        %v1010 = vpack.c.bf16 %v978, %v978
        %v1011 = vpack.c.bf16 %v979, %v979
        %v1012 = vpack.c.bf16 %v980, %v980
        %v1013 = vpack.c.bf16 %v981, %v981
        %v1014 = vpack.c.bf16 %v982, %v982
        %s1015 = scalar_lea.vmem [#allocation2], 48
        %v1016 = vld [vmem:[%s1015] sm:$0xff]
        %v1017 = vld [vmem:[%s1015 + $0x8] sm:$0xff]
        %v1018 = vld [vmem:[%s1015 + $0x18] sm:$0xff]
        %v1019 = vld [vmem:[%s1015 + $0x20] sm:$0xff]
        %v1020 = vld [vmem:[%s1015 + $0x30] sm:$0xff]
        %v1021 = vld [vmem:[%s1015 + $0x38] sm:$0xff]
        %v1022 = vld [vmem:[%s1015 + $0x48] sm:$0xff]
        %v1023 = vld [vmem:[%s1015 + $0x50] sm:$0xff]
        %v1024 = vld [vmem:[%s1015 + $0x60] sm:$0xff]
        %v1025 = vld [vmem:[%s1015 + $0x68] sm:$0xff]
        %v1026 = vld [vmem:[%s1015 + $0x78] sm:$0xff]
        %v1027 = vld [vmem:[%s1015 + $0x80] sm:$0xff]
        %v1028 = vld [vmem:[%s1015 + $0x90] sm:$0xff]
        %v1029 = vld [vmem:[%s1015 + $0x98] sm:$0xff]
        %v1030 = vld [vmem:[%s1015 + $0xa8] sm:$0xff]
        %v1031 = vld [vmem:[%s1015 + $0xb0] sm:$0xff]
        %v1032 = vld [vmem:[%s1015 + $0xc0] sm:$0xff]
        %v1033 = vld [vmem:[%s1015 + $0xc8] sm:$0xff]
        %v1034 = vld [vmem:[%s1015 + $0xd8] sm:$0xff]
        %v1035 = vld [vmem:[%s1015 + $0xe0] sm:$0xff]
        %v1036 = vld [vmem:[%s1015 + $0xf0] sm:$0xff]
        %v1037 = vld [vmem:[%s1015 + $0xf8] sm:$0xff]
        %v1038 = vld [vmem:[%s1015 + $0x108] sm:$0xff]
        %v1039 = vld [vmem:[%s1015 + $0x110] sm:$0xff]
        %v1040 = vld [vmem:[%s1015 + $0x120] sm:$0xff]
        %v1041 = vld [vmem:[%s1015 + $0x128] sm:$0xff]
        %v1042 = vld [vmem:[%s1015 + $0x138] sm:$0xff]
        %v1043 = vld [vmem:[%s1015 + $0x140] sm:$0xff]
        %v1044 = vld [vmem:[%s1015 + $0x150] sm:$0xff]
        %v1045 = vld [vmem:[%s1015 + $0x158] sm:$0xff]
        %v1046 = vld [vmem:[%s1015 + $0x168] sm:$0xff]
        %v1047 = vld [vmem:[%s1015 + $0x170] sm:$0xff]
        %v1048 = vpack.c.bf16 %v1016, %v1016
        %v1049 = vpack.c.bf16 %v1017, %v1017
        %v1050 = vpack.c.bf16 %v1018, %v1018
        %v1051 = vpack.c.bf16 %v1019, %v1019
        %v1052 = vpack.c.bf16 %v1020, %v1020
        %v1053 = vpack.c.bf16 %v1021, %v1021
        %v1054 = vpack.c.bf16 %v1022, %v1022
        %v1055 = vpack.c.bf16 %v1023, %v1023
        %v1056 = vpack.c.bf16 %v1024, %v1024
        %v1057 = vpack.c.bf16 %v1025, %v1025
        %v1058 = vpack.c.bf16 %v1026, %v1026
        %v1059 = vpack.c.bf16 %v1027, %v1027
        %v1060 = vpack.c.bf16 %v1028, %v1028
        %v1061 = vpack.c.bf16 %v1029, %v1029
        %v1062 = vpack.c.bf16 %v1030, %v1030
        %v1063 = vpack.c.bf16 %v1031, %v1031
        %v1064 = vpack.c.bf16 %v1032, %v1032
        %v1065 = vpack.c.bf16 %v1033, %v1033
        %v1066 = vpack.c.bf16 %v1034, %v1034
        %v1067 = vpack.c.bf16 %v1035, %v1035
        %v1068 = vpack.c.bf16 %v1036, %v1036
        %v1069 = vpack.c.bf16 %v1037, %v1037
        %v1070 = vpack.c.bf16 %v1038, %v1038
        %v1071 = vpack.c.bf16 %v1039, %v1039
        %v1072 = vpack.c.bf16 %v1040, %v1040
        %v1073 = vpack.c.bf16 %v1041, %v1041
        %v1074 = vpack.c.bf16 %v1042, %v1042
        %v1075 = vpack.c.bf16 %v1043, %v1043
        %v1076 = vpack.c.bf16 %v1044, %v1044
        %v1077 = vpack.c.bf16 %v1045, %v1045
        %v1078 = vpack.c.bf16 %v1046, %v1046
        %v1079 = vpack.c.bf16 %v1047, %v1047
        %v1080 = vld [vmem:[%s1015 + $0x1] sm:$0xff]
        %v1081 = vld [vmem:[%s1015 + $0x9] sm:$0xff]
        %v1082 = vld [vmem:[%s1015 + $0x19] sm:$0xff]
        %v1083 = vld [vmem:[%s1015 + $0x21] sm:$0xff]
        %v1084 = vld [vmem:[%s1015 + $0x31] sm:$0xff]
        %v1085 = vld [vmem:[%s1015 + $0x39] sm:$0xff]
        %v1086 = vld [vmem:[%s1015 + $0x49] sm:$0xff]
        %v1087 = vld [vmem:[%s1015 + $0x51] sm:$0xff]
        %v1088 = vld [vmem:[%s1015 + $0x61] sm:$0xff]
        %v1089 = vld [vmem:[%s1015 + $0x69] sm:$0xff]
        %v1090 = vld [vmem:[%s1015 + $0x79] sm:$0xff]
        %v1091 = vld [vmem:[%s1015 + $0x81] sm:$0xff]
        %v1092 = vld [vmem:[%s1015 + $0x91] sm:$0xff]
        %v1093 = vld [vmem:[%s1015 + $0x99] sm:$0xff]
        %v1094 = vld [vmem:[%s1015 + $0xa9] sm:$0xff]
        %v1095 = vld [vmem:[%s1015 + $0xb1] sm:$0xff]
        %v1096 = vld [vmem:[%s1015 + $0xc1] sm:$0xff]
        %v1097 = vld [vmem:[%s1015 + $0xc9] sm:$0xff]
        %v1098 = vld [vmem:[%s1015 + $0xd9] sm:$0xff]
        %v1099 = vld [vmem:[%s1015 + $0xe1] sm:$0xff]
        %v1100 = vld [vmem:[%s1015 + $0xf1] sm:$0xff]
        %v1101 = vld [vmem:[%s1015 + $0xf9] sm:$0xff]
        %v1102 = vld [vmem:[%s1015 + $0x109] sm:$0xff]
        %v1103 = vld [vmem:[%s1015 + $0x111] sm:$0xff]
        %v1104 = vld [vmem:[%s1015 + $0x121] sm:$0xff]
        %v1105 = vld [vmem:[%s1015 + $0x129] sm:$0xff]
        %v1106 = vld [vmem:[%s1015 + $0x139] sm:$0xff]
        %v1107 = vld [vmem:[%s1015 + $0x141] sm:$0xff]
        %v1108 = vld [vmem:[%s1015 + $0x151] sm:$0xff]
        %v1109 = vld [vmem:[%s1015 + $0x159] sm:$0xff]
        %v1110 = vld [vmem:[%s1015 + $0x169] sm:$0xff]
        %v1111 = vld [vmem:[%s1015 + $0x171] sm:$0xff]
        %v1112 = vpack.c.bf16 %v1080, %v1080
        %v1113 = vpack.c.bf16 %v1081, %v1081
        %v1114 = vpack.c.bf16 %v1082, %v1082
        %v1115 = vpack.c.bf16 %v1083, %v1083
        %v1116 = vpack.c.bf16 %v1084, %v1084
        %v1117 = vpack.c.bf16 %v1085, %v1085
        %v1118 = vpack.c.bf16 %v1086, %v1086
        %v1119 = vpack.c.bf16 %v1087, %v1087
        %v1120 = vpack.c.bf16 %v1088, %v1088
        %v1121 = vpack.c.bf16 %v1089, %v1089
        %v1122 = vpack.c.bf16 %v1090, %v1090
        %v1123 = vpack.c.bf16 %v1091, %v1091
        %v1124 = vpack.c.bf16 %v1092, %v1092
        %v1125 = vpack.c.bf16 %v1093, %v1093
        %v1126 = vpack.c.bf16 %v1094, %v1094
        %v1127 = vpack.c.bf16 %v1095, %v1095
        %v1128 = vpack.c.bf16 %v1096, %v1096
        %v1129 = vpack.c.bf16 %v1097, %v1097
        %v1130 = vpack.c.bf16 %v1098, %v1098
        %v1131 = vpack.c.bf16 %v1099, %v1099
        %v1132 = vpack.c.bf16 %v1100, %v1100
        %v1133 = vpack.c.bf16 %v1101, %v1101
        %v1134 = vpack.c.bf16 %v1102, %v1102
        %v1135 = vpack.c.bf16 %v1103, %v1103
        %v1136 = vpack.c.bf16 %v1104, %v1104
        %v1137 = vpack.c.bf16 %v1105, %v1105
        %v1138 = vpack.c.bf16 %v1106, %v1106
        %v1139 = vpack.c.bf16 %v1107, %v1107
        %v1140 = vpack.c.bf16 %v1108, %v1108
        %v1141 = vpack.c.bf16 %v1109, %v1109
        %v1142 = vpack.c.bf16 %v1110, %v1110
        %v1143 = vpack.c.bf16 %v1111, %v1111
        %v1144 = vld [vmem:[%s1015 + $0x2] sm:$0xff]
        %v1145 = vld [vmem:[%s1015 + $0xa] sm:$0xff]
        %v1146 = vld [vmem:[%s1015 + $0x1a] sm:$0xff]
        %v1147 = vld [vmem:[%s1015 + $0x22] sm:$0xff]
        %v1148 = vld [vmem:[%s1015 + $0x32] sm:$0xff]
        %v1149 = vld [vmem:[%s1015 + $0x3a] sm:$0xff]
        %v1150 = vld [vmem:[%s1015 + $0x4a] sm:$0xff]
        %v1151 = vld [vmem:[%s1015 + $0x52] sm:$0xff]
        %v1152 = vld [vmem:[%s1015 + $0x62] sm:$0xff]
        %v1153 = vld [vmem:[%s1015 + $0x6a] sm:$0xff]
        %v1154 = vld [vmem:[%s1015 + $0x7a] sm:$0xff]
        %v1155 = vld [vmem:[%s1015 + $0x82] sm:$0xff]
        %v1156 = vld [vmem:[%s1015 + $0x92] sm:$0xff]
        %v1157 = vld [vmem:[%s1015 + $0x9a] sm:$0xff]
        %v1158 = vld [vmem:[%s1015 + $0xaa] sm:$0xff]
        %v1159 = vld [vmem:[%s1015 + $0xb2] sm:$0xff]
        %v1160 = vld [vmem:[%s1015 + $0xc2] sm:$0xff]
        %v1161 = vld [vmem:[%s1015 + $0xca] sm:$0xff]
        %v1162 = vld [vmem:[%s1015 + $0xda] sm:$0xff]
        %v1163 = vld [vmem:[%s1015 + $0xe2] sm:$0xff]
        %v1164 = vld [vmem:[%s1015 + $0xf2] sm:$0xff]
        %v1165 = vld [vmem:[%s1015 + $0xfa] sm:$0xff]
        %v1166 = vld [vmem:[%s1015 + $0x10a] sm:$0xff]
        %v1167 = vld [vmem:[%s1015 + $0x112] sm:$0xff]
        %v1168 = vld [vmem:[%s1015 + $0x122] sm:$0xff]
        %v1169 = vld [vmem:[%s1015 + $0x12a] sm:$0xff]
        %v1170 = vld [vmem:[%s1015 + $0x13a] sm:$0xff]
        %v1171 = vld [vmem:[%s1015 + $0x142] sm:$0xff]
        %v1172 = vld [vmem:[%s1015 + $0x152] sm:$0xff]
        %v1173 = vld [vmem:[%s1015 + $0x15a] sm:$0xff]
        %v1174 = vld [vmem:[%s1015 + $0x16a] sm:$0xff]
        %v1175 = vld [vmem:[%s1015 + $0x172] sm:$0xff]
        %v1176 = vpack.c.bf16 %v1144, %v1144
        %v1177 = vpack.c.bf16 %v1145, %v1145
        %v1178 = vpack.c.bf16 %v1146, %v1146
        %v1179 = vpack.c.bf16 %v1147, %v1147
        %v1180 = vpack.c.bf16 %v1148, %v1148
        %v1181 = vpack.c.bf16 %v1149, %v1149
        %v1182 = vpack.c.bf16 %v1150, %v1150
        %v1183 = vpack.c.bf16 %v1151, %v1151
        %v1184 = vpack.c.bf16 %v1152, %v1152
        %v1185 = vpack.c.bf16 %v1153, %v1153
        %v1186 = vpack.c.bf16 %v1154, %v1154
        %v1187 = vpack.c.bf16 %v1155, %v1155
        %v1188 = vpack.c.bf16 %v1156, %v1156
        %v1189 = vpack.c.bf16 %v1157, %v1157
        %v1190 = vpack.c.bf16 %v1158, %v1158
        %v1191 = vpack.c.bf16 %v1159, %v1159
        %v1192 = vpack.c.bf16 %v1160, %v1160
        %v1193 = vpack.c.bf16 %v1161, %v1161
        %v1194 = vpack.c.bf16 %v1162, %v1162
        %v1195 = vpack.c.bf16 %v1163, %v1163
        %v1196 = vpack.c.bf16 %v1164, %v1164
        %v1197 = vpack.c.bf16 %v1165, %v1165
        %v1198 = vpack.c.bf16 %v1166, %v1166
        %v1199 = vpack.c.bf16 %v1167, %v1167
        %v1200 = vpack.c.bf16 %v1168, %v1168
        %v1201 = vpack.c.bf16 %v1169, %v1169
        %v1202 = vpack.c.bf16 %v1170, %v1170
        %v1203 = vpack.c.bf16 %v1171, %v1171
        %v1204 = vpack.c.bf16 %v1172, %v1172
        %v1205 = vpack.c.bf16 %v1173, %v1173
        %v1206 = vpack.c.bf16 %v1174, %v1174
        %v1207 = vpack.c.bf16 %v1175, %v1175
        %v1240 = vunpack.c.l.b16 %v663
        %v1241 = vunpack.c.l.b16 %v664
        %v1242 = vunpack.c.l.b16 %v665
        %v1243 = vunpack.c.l.b16 %v666
        %v1244 = vunpack.c.l.b16 %v667
        %v1245 = vunpack.c.l.b16 %v668
        %v1246 = vunpack.c.l.b16 %v669
        %v1247 = vunpack.c.l.b16 %v670
        %v1248 = vunpack.c.l.b16 %v671
        %v1249 = vunpack.c.l.b16 %v672
        %v1250 = vunpack.c.l.b16 %v673
        %v1251 = vunpack.c.l.b16 %v674
        %v1252 = vunpack.c.l.b16 %v675
        %v1253 = vunpack.c.l.b16 %v676
        %v1254 = vunpack.c.l.b16 %v677
        %v1255 = vunpack.c.l.b16 %v678
        %v1256 = vunpack.c.l.b16 %v679
        %v1257 = vunpack.c.l.b16 %v680
        %v1258 = vunpack.c.l.b16 %v681
        %v1259 = vunpack.c.l.b16 %v682
        %v1260 = vunpack.c.l.b16 %v683
        %v1261 = vunpack.c.l.b16 %v684
        %v1262 = vunpack.c.l.b16 %v685
        %v1263 = vunpack.c.l.b16 %v686
        %v1264 = vunpack.c.l.b16 %v687
        %v1265 = vunpack.c.l.b16 %v688
        %v1266 = vunpack.c.l.b16 %v689
        %v1267 = vunpack.c.l.b16 %v690
        %v1268 = vunpack.c.l.b16 %v691
        %v1269 = vunpack.c.l.b16 %v692
        %v1270 = vunpack.c.l.b16 %v693
        %v1271 = vunpack.c.l.b16 %v694
        %v1272 = vpack.c.b16 %v1241, %v1240
        %v1273 = vpack.c.b16 %v1243, %v1242
        %v1274 = vpack.c.b16 %v1245, %v1244
        %v1275 = vpack.c.b16 %v1247, %v1246
        %v1276 = vpack.c.b16 %v1249, %v1248
        %v1277 = vpack.c.b16 %v1251, %v1250
        %v1278 = vpack.c.b16 %v1253, %v1252
        %v1279 = vpack.c.b16 %v1255, %v1254
        %v1280 = vpack.c.b16 %v1257, %v1256
        %v1281 = vpack.c.b16 %v1259, %v1258
        %v1282 = vpack.c.b16 %v1261, %v1260
        %v1283 = vpack.c.b16 %v1263, %v1262
        %v1284 = vpack.c.b16 %v1265, %v1264
        %v1285 = vpack.c.b16 %v1267, %v1266
        %v1286 = vpack.c.b16 %v1269, %v1268
        %v1287 = vpack.c.b16 %v1271, %v1270
        %v1320 = vunpack.c.l.b16 %v727
        %v1321 = vunpack.c.l.b16 %v728
        %v1322 = vunpack.c.l.b16 %v729
        %v1323 = vunpack.c.l.b16 %v730
        %v1324 = vunpack.c.l.b16 %v731
        %v1325 = vunpack.c.l.b16 %v732
        %v1326 = vunpack.c.l.b16 %v733
        %v1327 = vunpack.c.l.b16 %v734
        %v1328 = vunpack.c.l.b16 %v735
        %v1329 = vunpack.c.l.b16 %v736
        %v1330 = vunpack.c.l.b16 %v737
        %v1331 = vunpack.c.l.b16 %v738
        %v1332 = vunpack.c.l.b16 %v739
        %v1333 = vunpack.c.l.b16 %v740
        %v1334 = vunpack.c.l.b16 %v741
        %v1335 = vunpack.c.l.b16 %v742
        %v1336 = vunpack.c.l.b16 %v743
        %v1337 = vunpack.c.l.b16 %v744
        %v1338 = vunpack.c.l.b16 %v745
        %v1339 = vunpack.c.l.b16 %v746
        %v1340 = vunpack.c.l.b16 %v747
        %v1341 = vunpack.c.l.b16 %v748
        %v1342 = vunpack.c.l.b16 %v749
        %v1343 = vunpack.c.l.b16 %v750
        %v1344 = vunpack.c.l.b16 %v751
        %v1345 = vunpack.c.l.b16 %v752
        %v1346 = vunpack.c.l.b16 %v753
        %v1347 = vunpack.c.l.b16 %v754
        %v1348 = vunpack.c.l.b16 %v755
        %v1349 = vunpack.c.l.b16 %v756
        %v1350 = vunpack.c.l.b16 %v757
        %v1351 = vunpack.c.l.b16 %v758
        %v1352 = vpack.c.b16 %v1321, %v1320
        %v1353 = vpack.c.b16 %v1323, %v1322
        %v1354 = vpack.c.b16 %v1325, %v1324
        %v1355 = vpack.c.b16 %v1327, %v1326
        %v1356 = vpack.c.b16 %v1329, %v1328
        %v1357 = vpack.c.b16 %v1331, %v1330
        %v1358 = vpack.c.b16 %v1333, %v1332
        %v1359 = vpack.c.b16 %v1335, %v1334
        %v1360 = vpack.c.b16 %v1337, %v1336
        %v1361 = vpack.c.b16 %v1339, %v1338
        %v1362 = vpack.c.b16 %v1341, %v1340
        %v1363 = vpack.c.b16 %v1343, %v1342
        %v1364 = vpack.c.b16 %v1345, %v1344
        %v1365 = vpack.c.b16 %v1347, %v1346
        %v1366 = vpack.c.b16 %v1349, %v1348
        %v1367 = vpack.c.b16 %v1351, %v1350
        %1368 = vrot.lane.b32.xlu0 %v1352, 8
        %v1369 = vpop.permute.xlu0 %1368
        %1370 = vrot.lane.b32.xlu0 %v1353, 8
        %v1371 = vpop.permute.xlu0 %1370
        %1372 = vrot.lane.b32.xlu0 %v1354, 8
        %v1373 = vpop.permute.xlu0 %1372
        %1374 = vrot.lane.b32.xlu0 %v1355, 8
        %v1375 = vpop.permute.xlu0 %1374
        %1376 = vrot.lane.b32.xlu0 %v1356, 8
        %v1377 = vpop.permute.xlu0 %1376
        %1378 = vrot.lane.b32.xlu0 %v1357, 8
        %v1379 = vpop.permute.xlu0 %1378
        %1380 = vrot.lane.b32.xlu0 %v1358, 8
        %v1381 = vpop.permute.xlu0 %1380
        %1382 = vrot.lane.b32.xlu0 %v1359, 8
        %v1383 = vpop.permute.xlu0 %1382
        %1384 = vrot.lane.b32.xlu0 %v1360, 8
        %v1385 = vpop.permute.xlu0 %1384
        %1386 = vrot.lane.b32.xlu0 %v1361, 8
        %v1387 = vpop.permute.xlu0 %1386
        %1388 = vrot.lane.b32.xlu0 %v1362, 8
        %v1389 = vpop.permute.xlu0 %1388
        %1390 = vrot.lane.b32.xlu0 %v1363, 8
        %v1391 = vpop.permute.xlu0 %1390
        %1392 = vrot.lane.b32.xlu0 %v1364, 8
        %v1393 = vpop.permute.xlu0 %1392
        %1394 = vrot.lane.b32.xlu0 %v1365, 8
        %v1395 = vpop.permute.xlu0 %1394
        %1396 = vrot.lane.b32.xlu0 %v1366, 8
        %v1397 = vpop.permute.xlu0 %1396
        %1398 = vrot.lane.b32.xlu0 %v1367, 8
        %v1399 = vpop.permute.xlu0 %1398
        %v1432 = vunpack.c.l.b16 %v791
        %v1433 = vunpack.c.l.b16 %v792
        %v1434 = vunpack.c.l.b16 %v793
        %v1435 = vunpack.c.l.b16 %v794
        %v1436 = vunpack.c.l.b16 %v795
        %v1437 = vunpack.c.l.b16 %v796
        %v1438 = vunpack.c.l.b16 %v797
        %v1439 = vunpack.c.l.b16 %v798
        %v1440 = vunpack.c.l.b16 %v799
        %v1441 = vunpack.c.l.b16 %v800
        %v1442 = vunpack.c.l.b16 %v801
        %v1443 = vunpack.c.l.b16 %v802
        %v1444 = vunpack.c.l.b16 %v803
        %v1445 = vunpack.c.l.b16 %v804
        %v1446 = vunpack.c.l.b16 %v805
        %v1447 = vunpack.c.l.b16 %v806
        %v1448 = vunpack.c.l.b16 %v807
        %v1449 = vunpack.c.l.b16 %v808
        %v1450 = vunpack.c.l.b16 %v809
        %v1451 = vunpack.c.l.b16 %v810
        %v1452 = vunpack.c.l.b16 %v811
        %v1453 = vunpack.c.l.b16 %v812
        %v1454 = vunpack.c.l.b16 %v813
        %v1455 = vunpack.c.l.b16 %v814
        %v1456 = vunpack.c.l.b16 %v815
        %v1457 = vunpack.c.l.b16 %v816
        %v1458 = vunpack.c.l.b16 %v817
        %v1459 = vunpack.c.l.b16 %v818
        %v1460 = vunpack.c.l.b16 %v819
        %v1461 = vunpack.c.l.b16 %v820
        %v1462 = vunpack.c.l.b16 %v821
        %v1463 = vunpack.c.l.b16 %v822
        %v1464 = vpack.c.b16 %v1433, %v1432
        %v1465 = vpack.c.b16 %v1435, %v1434
        %v1466 = vpack.c.b16 %v1437, %v1436
        %v1467 = vpack.c.b16 %v1439, %v1438
        %v1468 = vpack.c.b16 %v1441, %v1440
        %v1469 = vpack.c.b16 %v1443, %v1442
        %v1470 = vpack.c.b16 %v1445, %v1444
        %v1471 = vpack.c.b16 %v1447, %v1446
        %v1472 = vpack.c.b16 %v1449, %v1448
        %v1473 = vpack.c.b16 %v1451, %v1450
        %v1474 = vpack.c.b16 %v1453, %v1452
        %v1475 = vpack.c.b16 %v1455, %v1454
        %v1476 = vpack.c.b16 %v1457, %v1456
        %v1477 = vpack.c.b16 %v1459, %v1458
        %v1478 = vpack.c.b16 %v1461, %v1460
        %v1479 = vpack.c.b16 %v1463, %v1462
        %1480 = vrot.lane.b32.xlu0 %v1464, 16
        %v1481 = vpop.permute.xlu0 %1480
        %1482 = vrot.lane.b32.xlu0 %v1465, 16
        %v1483 = vpop.permute.xlu0 %1482
        %1484 = vrot.lane.b32.xlu0 %v1466, 16
        %v1485 = vpop.permute.xlu0 %1484
        %1486 = vrot.lane.b32.xlu0 %v1467, 16
        %v1487 = vpop.permute.xlu0 %1486
        %1488 = vrot.lane.b32.xlu0 %v1468, 16
        %v1489 = vpop.permute.xlu0 %1488
        %1490 = vrot.lane.b32.xlu0 %v1469, 16
        %v1491 = vpop.permute.xlu0 %1490
        %1492 = vrot.lane.b32.xlu0 %v1470, 16
        %v1493 = vpop.permute.xlu0 %1492
        %1494 = vrot.lane.b32.xlu0 %v1471, 16
        %v1495 = vpop.permute.xlu0 %1494
        %1496 = vrot.lane.b32.xlu0 %v1472, 16
        %v1497 = vpop.permute.xlu0 %1496
        %1498 = vrot.lane.b32.xlu0 %v1473, 16
        %v1499 = vpop.permute.xlu0 %1498
        %1500 = vrot.lane.b32.xlu0 %v1474, 16
        %v1501 = vpop.permute.xlu0 %1500
        %1502 = vrot.lane.b32.xlu0 %v1475, 16
        %v1503 = vpop.permute.xlu0 %1502
        %1504 = vrot.lane.b32.xlu0 %v1476, 16
        %v1505 = vpop.permute.xlu0 %1504
        %1506 = vrot.lane.b32.xlu0 %v1477, 16
        %v1507 = vpop.permute.xlu0 %1506
        %1508 = vrot.lane.b32.xlu0 %v1478, 16
        %v1509 = vpop.permute.xlu0 %1508
        %1510 = vrot.lane.b32.xlu0 %v1479, 16
        %v1511 = vpop.permute.xlu0 %1510
        %v1544 = vunpack.c.l.b16 %v855
        %v1545 = vunpack.c.l.b16 %v856
        %v1546 = vunpack.c.l.b16 %v857
        %v1547 = vunpack.c.l.b16 %v858
        %v1548 = vunpack.c.l.b16 %v859
        %v1549 = vunpack.c.l.b16 %v860
        %v1550 = vunpack.c.l.b16 %v861
        %v1551 = vunpack.c.l.b16 %v862
        %v1552 = vunpack.c.l.b16 %v863
        %v1553 = vunpack.c.l.b16 %v864
        %v1554 = vunpack.c.l.b16 %v865
        %v1555 = vunpack.c.l.b16 %v866
        %v1556 = vunpack.c.l.b16 %v867
        %v1557 = vunpack.c.l.b16 %v868
        %v1558 = vunpack.c.l.b16 %v869
        %v1559 = vunpack.c.l.b16 %v870
        %v1560 = vunpack.c.l.b16 %v871
        %v1561 = vunpack.c.l.b16 %v872
        %v1562 = vunpack.c.l.b16 %v873
        %v1563 = vunpack.c.l.b16 %v874
        %v1564 = vunpack.c.l.b16 %v875
        %v1565 = vunpack.c.l.b16 %v876
        %v1566 = vunpack.c.l.b16 %v877
        %v1567 = vunpack.c.l.b16 %v878
        %v1568 = vunpack.c.l.b16 %v879
        %v1569 = vunpack.c.l.b16 %v880
        %v1570 = vunpack.c.l.b16 %v881
        %v1571 = vunpack.c.l.b16 %v882
        %v1572 = vunpack.c.l.b16 %v883
        %v1573 = vunpack.c.l.b16 %v884
        %v1574 = vunpack.c.l.b16 %v885
        %v1575 = vunpack.c.l.b16 %v886
        %v1576 = vpack.c.b16 %v1545, %v1544
        %v1577 = vpack.c.b16 %v1547, %v1546
        %v1578 = vpack.c.b16 %v1549, %v1548
        %v1579 = vpack.c.b16 %v1551, %v1550
        %v1580 = vpack.c.b16 %v1553, %v1552
        %v1581 = vpack.c.b16 %v1555, %v1554
        %v1582 = vpack.c.b16 %v1557, %v1556
        %v1583 = vpack.c.b16 %v1559, %v1558
        %v1584 = vpack.c.b16 %v1561, %v1560
        %v1585 = vpack.c.b16 %v1563, %v1562
        %v1586 = vpack.c.b16 %v1565, %v1564
        %v1587 = vpack.c.b16 %v1567, %v1566
        %v1588 = vpack.c.b16 %v1569, %v1568
        %v1589 = vpack.c.b16 %v1571, %v1570
        %v1590 = vpack.c.b16 %v1573, %v1572
        %v1591 = vpack.c.b16 %v1575, %v1574
        %1592 = vrot.lane.b32.xlu0 %v1576, 24
        %v1593 = vpop.permute.xlu0 %1592
        %1594 = vrot.lane.b32.xlu0 %v1577, 24
        %v1595 = vpop.permute.xlu0 %1594
        %1596 = vrot.lane.b32.xlu0 %v1578, 24
        %v1597 = vpop.permute.xlu0 %1596
        %1598 = vrot.lane.b32.xlu0 %v1579, 24
        %v1599 = vpop.permute.xlu0 %1598
        %1600 = vrot.lane.b32.xlu0 %v1580, 24
        %v1601 = vpop.permute.xlu0 %1600
        %1602 = vrot.lane.b32.xlu0 %v1581, 24
        %v1603 = vpop.permute.xlu0 %1602
        %1604 = vrot.lane.b32.xlu0 %v1582, 24
        %v1605 = vpop.permute.xlu0 %1604
        %1606 = vrot.lane.b32.xlu0 %v1583, 24
        %v1607 = vpop.permute.xlu0 %1606
        %1608 = vrot.lane.b32.xlu0 %v1584, 24
        %v1609 = vpop.permute.xlu0 %1608
        %1610 = vrot.lane.b32.xlu0 %v1585, 24
        %v1611 = vpop.permute.xlu0 %1610
        %1612 = vrot.lane.b32.xlu0 %v1586, 24
        %v1613 = vpop.permute.xlu0 %1612
        %1614 = vrot.lane.b32.xlu0 %v1587, 24
        %v1615 = vpop.permute.xlu0 %1614
        %1616 = vrot.lane.b32.xlu0 %v1588, 24
        %v1617 = vpop.permute.xlu0 %1616
        %1618 = vrot.lane.b32.xlu0 %v1589, 24
        %v1619 = vpop.permute.xlu0 %1618
        %1620 = vrot.lane.b32.xlu0 %v1590, 24
        %v1621 = vpop.permute.xlu0 %1620
        %1622 = vrot.lane.b32.xlu0 %v1591, 24
        %v1623 = vpop.permute.xlu0 %1622
        %v1656 = vunpack.c.l.b16 %v919
        %v1657 = vunpack.c.l.b16 %v920
        %v1658 = vunpack.c.l.b16 %v921
        %v1659 = vunpack.c.l.b16 %v922
        %v1660 = vunpack.c.l.b16 %v923
        %v1661 = vunpack.c.l.b16 %v924
        %v1662 = vunpack.c.l.b16 %v925
        %v1663 = vunpack.c.l.b16 %v926
        %v1664 = vunpack.c.l.b16 %v927
        %v1665 = vunpack.c.l.b16 %v928
        %v1666 = vunpack.c.l.b16 %v929
        %v1667 = vunpack.c.l.b16 %v930
        %v1668 = vunpack.c.l.b16 %v931
        %v1669 = vunpack.c.l.b16 %v932
        %v1670 = vunpack.c.l.b16 %v933
        %v1671 = vunpack.c.l.b16 %v934
        %v1672 = vunpack.c.l.b16 %v935
        %v1673 = vunpack.c.l.b16 %v936
        %v1674 = vunpack.c.l.b16 %v937
        %v1675 = vunpack.c.l.b16 %v938
        %v1676 = vunpack.c.l.b16 %v939
        %v1677 = vunpack.c.l.b16 %v940
        %v1678 = vunpack.c.l.b16 %v941
        %v1679 = vunpack.c.l.b16 %v942
        %v1680 = vunpack.c.l.b16 %v943
        %v1681 = vunpack.c.l.b16 %v944
        %v1682 = vunpack.c.l.b16 %v945
        %v1683 = vunpack.c.l.b16 %v946
        %v1684 = vunpack.c.l.b16 %v947
        %v1685 = vunpack.c.l.b16 %v948
        %v1686 = vunpack.c.l.b16 %v949
        %v1687 = vunpack.c.l.b16 %v950
        %v1688 = vpack.c.b16 %v1657, %v1656
        %v1689 = vpack.c.b16 %v1659, %v1658
        %v1690 = vpack.c.b16 %v1661, %v1660
        %v1691 = vpack.c.b16 %v1663, %v1662
        %v1692 = vpack.c.b16 %v1665, %v1664
        %v1693 = vpack.c.b16 %v1667, %v1666
        %v1694 = vpack.c.b16 %v1669, %v1668
        %v1695 = vpack.c.b16 %v1671, %v1670
        %v1696 = vpack.c.b16 %v1673, %v1672
        %v1697 = vpack.c.b16 %v1675, %v1674
        %v1698 = vpack.c.b16 %v1677, %v1676
        %v1699 = vpack.c.b16 %v1679, %v1678
        %v1700 = vpack.c.b16 %v1681, %v1680
        %v1701 = vpack.c.b16 %v1683, %v1682
        %v1702 = vpack.c.b16 %v1685, %v1684
        %v1703 = vpack.c.b16 %v1687, %v1686
        %1704 = vrot.lane.b32.xlu0 %v1688, 32
        %v1705 = vpop.permute.xlu0 %1704
        %1706 = vrot.lane.b32.xlu0 %v1689, 32
        %v1707 = vpop.permute.xlu0 %1706
        %1708 = vrot.lane.b32.xlu0 %v1690, 32
        %v1709 = vpop.permute.xlu0 %1708
        %1710 = vrot.lane.b32.xlu0 %v1691, 32
        %v1711 = vpop.permute.xlu0 %1710
        %1712 = vrot.lane.b32.xlu0 %v1692, 32
        %v1713 = vpop.permute.xlu0 %1712
        %1714 = vrot.lane.b32.xlu0 %v1693, 32
        %v1715 = vpop.permute.xlu0 %1714
        %1716 = vrot.lane.b32.xlu0 %v1694, 32
        %v1717 = vpop.permute.xlu0 %1716
        %1718 = vrot.lane.b32.xlu0 %v1695, 32
        %v1719 = vpop.permute.xlu0 %1718
        %1720 = vrot.lane.b32.xlu0 %v1696, 32
        %v1721 = vpop.permute.xlu0 %1720
        %1722 = vrot.lane.b32.xlu0 %v1697, 32
        %v1723 = vpop.permute.xlu0 %1722
        %1724 = vrot.lane.b32.xlu0 %v1698, 32
        %v1725 = vpop.permute.xlu0 %1724
        %1726 = vrot.lane.b32.xlu0 %v1699, 32
        %v1727 = vpop.permute.xlu0 %1726
        %1728 = vrot.lane.b32.xlu0 %v1700, 32
        %v1729 = vpop.permute.xlu0 %1728
        %1730 = vrot.lane.b32.xlu0 %v1701, 32
        %v1731 = vpop.permute.xlu0 %1730
        %1732 = vrot.lane.b32.xlu0 %v1702, 32
        %v1733 = vpop.permute.xlu0 %1732
        %1734 = vrot.lane.b32.xlu0 %v1703, 32
        %v1735 = vpop.permute.xlu0 %1734
        %v1768 = vunpack.c.l.b16 %v983
        %v1769 = vunpack.c.l.b16 %v984
        %v1770 = vunpack.c.l.b16 %v985
        %v1771 = vunpack.c.l.b16 %v986
        %v1772 = vunpack.c.l.b16 %v987
        %v1773 = vunpack.c.l.b16 %v988
        %v1774 = vunpack.c.l.b16 %v989
        %v1775 = vunpack.c.l.b16 %v990
        %v1776 = vunpack.c.l.b16 %v991
        %v1777 = vunpack.c.l.b16 %v992
        %v1778 = vunpack.c.l.b16 %v993
        %v1779 = vunpack.c.l.b16 %v994
        %v1780 = vunpack.c.l.b16 %v995
        %v1781 = vunpack.c.l.b16 %v996
        %v1782 = vunpack.c.l.b16 %v997
        %v1783 = vunpack.c.l.b16 %v998
        %v1784 = vunpack.c.l.b16 %v999
        %v1785 = vunpack.c.l.b16 %v1000
        %v1786 = vunpack.c.l.b16 %v1001
        %v1787 = vunpack.c.l.b16 %v1002
        %v1788 = vunpack.c.l.b16 %v1003
        %v1789 = vunpack.c.l.b16 %v1004
        %v1790 = vunpack.c.l.b16 %v1005
        %v1791 = vunpack.c.l.b16 %v1006
        %v1792 = vunpack.c.l.b16 %v1007
        %v1793 = vunpack.c.l.b16 %v1008
        %v1794 = vunpack.c.l.b16 %v1009
        %v1795 = vunpack.c.l.b16 %v1010
        %v1796 = vunpack.c.l.b16 %v1011
        %v1797 = vunpack.c.l.b16 %v1012
        %v1798 = vunpack.c.l.b16 %v1013
        %v1799 = vunpack.c.l.b16 %v1014
        %v1800 = vpack.c.b16 %v1769, %v1768
        %v1801 = vpack.c.b16 %v1771, %v1770
        %v1802 = vpack.c.b16 %v1773, %v1772
        %v1803 = vpack.c.b16 %v1775, %v1774
        %v1804 = vpack.c.b16 %v1777, %v1776
        %v1805 = vpack.c.b16 %v1779, %v1778
        %v1806 = vpack.c.b16 %v1781, %v1780
        %v1807 = vpack.c.b16 %v1783, %v1782
        %v1808 = vpack.c.b16 %v1785, %v1784
        %v1809 = vpack.c.b16 %v1787, %v1786
        %v1810 = vpack.c.b16 %v1789, %v1788
        %v1811 = vpack.c.b16 %v1791, %v1790
        %v1812 = vpack.c.b16 %v1793, %v1792
        %v1813 = vpack.c.b16 %v1795, %v1794
        %v1814 = vpack.c.b16 %v1797, %v1796
        %v1815 = vpack.c.b16 %v1799, %v1798
        %1816 = vrot.lane.b32.xlu0 %v1800, 40
        %v1817 = vpop.permute.xlu0 %1816
        %1818 = vrot.lane.b32.xlu0 %v1801, 40
        %v1819 = vpop.permute.xlu0 %1818
        %1820 = vrot.lane.b32.xlu0 %v1802, 40
        %v1821 = vpop.permute.xlu0 %1820
        %1822 = vrot.lane.b32.xlu0 %v1803, 40
        %v1823 = vpop.permute.xlu0 %1822
        %1824 = vrot.lane.b32.xlu0 %v1804, 40
        %v1825 = vpop.permute.xlu0 %1824
        %1826 = vrot.lane.b32.xlu0 %v1805, 40
        %v1827 = vpop.permute.xlu0 %1826
        %1828 = vrot.lane.b32.xlu0 %v1806, 40
        %v1829 = vpop.permute.xlu0 %1828
        %1830 = vrot.lane.b32.xlu0 %v1807, 40
        %v1831 = vpop.permute.xlu0 %1830
        %1832 = vrot.lane.b32.xlu0 %v1808, 40
        %v1833 = vpop.permute.xlu0 %1832
        %1834 = vrot.lane.b32.xlu0 %v1809, 40
        %v1835 = vpop.permute.xlu0 %1834
        %1836 = vrot.lane.b32.xlu0 %v1810, 40
        %v1837 = vpop.permute.xlu0 %1836
        %1838 = vrot.lane.b32.xlu0 %v1811, 40
        %v1839 = vpop.permute.xlu0 %1838
        %1840 = vrot.lane.b32.xlu0 %v1812, 40
        %v1841 = vpop.permute.xlu0 %1840
        %1842 = vrot.lane.b32.xlu0 %v1813, 40
        %v1843 = vpop.permute.xlu0 %1842
        %1844 = vrot.lane.b32.xlu0 %v1814, 40
        %v1845 = vpop.permute.xlu0 %1844
        %1846 = vrot.lane.b32.xlu0 %v1815, 40
        %v1847 = vpop.permute.xlu0 %1846
        %v1880 = vunpack.c.l.b16 %v1048
        %v1881 = vunpack.c.l.b16 %v1049
        %v1882 = vunpack.c.l.b16 %v1050
        %v1883 = vunpack.c.l.b16 %v1051
        %v1884 = vunpack.c.l.b16 %v1052
        %v1885 = vunpack.c.l.b16 %v1053
        %v1886 = vunpack.c.l.b16 %v1054
        %v1887 = vunpack.c.l.b16 %v1055
        %v1888 = vunpack.c.l.b16 %v1056
        %v1889 = vunpack.c.l.b16 %v1057
        %v1890 = vunpack.c.l.b16 %v1058
        %v1891 = vunpack.c.l.b16 %v1059
        %v1892 = vunpack.c.l.b16 %v1060
        %v1893 = vunpack.c.l.b16 %v1061
        %v1894 = vunpack.c.l.b16 %v1062
        %v1895 = vunpack.c.l.b16 %v1063
        %v1896 = vunpack.c.l.b16 %v1064
        %v1897 = vunpack.c.l.b16 %v1065
        %v1898 = vunpack.c.l.b16 %v1066
        %v1899 = vunpack.c.l.b16 %v1067
        %v1900 = vunpack.c.l.b16 %v1068
        %v1901 = vunpack.c.l.b16 %v1069
        %v1902 = vunpack.c.l.b16 %v1070
        %v1903 = vunpack.c.l.b16 %v1071
        %v1904 = vunpack.c.l.b16 %v1072
        %v1905 = vunpack.c.l.b16 %v1073
        %v1906 = vunpack.c.l.b16 %v1074
        %v1907 = vunpack.c.l.b16 %v1075
        %v1908 = vunpack.c.l.b16 %v1076
        %v1909 = vunpack.c.l.b16 %v1077
        %v1910 = vunpack.c.l.b16 %v1078
        %v1911 = vunpack.c.l.b16 %v1079
        %v1912 = vpack.c.b16 %v1881, %v1880
        %v1913 = vpack.c.b16 %v1883, %v1882
        %v1914 = vpack.c.b16 %v1885, %v1884
        %v1915 = vpack.c.b16 %v1887, %v1886
        %v1916 = vpack.c.b16 %v1889, %v1888
        %v1917 = vpack.c.b16 %v1891, %v1890
        %v1918 = vpack.c.b16 %v1893, %v1892
        %v1919 = vpack.c.b16 %v1895, %v1894
        %v1920 = vpack.c.b16 %v1897, %v1896
        %v1921 = vpack.c.b16 %v1899, %v1898
        %v1922 = vpack.c.b16 %v1901, %v1900
        %v1923 = vpack.c.b16 %v1903, %v1902
        %v1924 = vpack.c.b16 %v1905, %v1904
        %v1925 = vpack.c.b16 %v1907, %v1906
        %v1926 = vpack.c.b16 %v1909, %v1908
        %v1927 = vpack.c.b16 %v1911, %v1910
        %1928 = vrot.lane.b32.xlu0 %v1912, 48
        %v1929 = vpop.permute.xlu0 %1928
        %1930 = vrot.lane.b32.xlu0 %v1913, 48
        %v1931 = vpop.permute.xlu0 %1930
        %1932 = vrot.lane.b32.xlu0 %v1914, 48
        %v1933 = vpop.permute.xlu0 %1932
        %1934 = vrot.lane.b32.xlu0 %v1915, 48
        %v1935 = vpop.permute.xlu0 %1934
        %1936 = vrot.lane.b32.xlu0 %v1916, 48
        %v1937 = vpop.permute.xlu0 %1936
        %1938 = vrot.lane.b32.xlu0 %v1917, 48
        %v1939 = vpop.permute.xlu0 %1938
        %1940 = vrot.lane.b32.xlu0 %v1918, 48
        %v1941 = vpop.permute.xlu0 %1940
        %1942 = vrot.lane.b32.xlu0 %v1919, 48
        %v1943 = vpop.permute.xlu0 %1942
        %1944 = vrot.lane.b32.xlu0 %v1920, 48
        %v1945 = vpop.permute.xlu0 %1944
        %1946 = vrot.lane.b32.xlu0 %v1921, 48
        %v1947 = vpop.permute.xlu0 %1946
        %1948 = vrot.lane.b32.xlu0 %v1922, 48
        %v1949 = vpop.permute.xlu0 %1948
        %1950 = vrot.lane.b32.xlu0 %v1923, 48
        %v1951 = vpop.permute.xlu0 %1950
        %1952 = vrot.lane.b32.xlu0 %v1924, 48
        %v1953 = vpop.permute.xlu0 %1952
        %1954 = vrot.lane.b32.xlu0 %v1925, 48
        %v1955 = vpop.permute.xlu0 %1954
        %1956 = vrot.lane.b32.xlu0 %v1926, 48
        %v1957 = vpop.permute.xlu0 %1956
        %1958 = vrot.lane.b32.xlu0 %v1927, 48
        %v1959 = vpop.permute.xlu0 %1958
        %v1992 = vunpack.c.l.b16 %v1112
        %v1993 = vunpack.c.l.b16 %v1113
        %v1994 = vunpack.c.l.b16 %v1114
        %v1995 = vunpack.c.l.b16 %v1115
        %v1996 = vunpack.c.l.b16 %v1116
        %v1997 = vunpack.c.l.b16 %v1117
        %v1998 = vunpack.c.l.b16 %v1118
        %v1999 = vunpack.c.l.b16 %v1119
        %v2000 = vunpack.c.l.b16 %v1120
        %v2001 = vunpack.c.l.b16 %v1121
        %v2002 = vunpack.c.l.b16 %v1122
        %v2003 = vunpack.c.l.b16 %v1123
        %v2004 = vunpack.c.l.b16 %v1124
        %v2005 = vunpack.c.l.b16 %v1125
        %v2006 = vunpack.c.l.b16 %v1126
        %v2007 = vunpack.c.l.b16 %v1127
        %v2008 = vunpack.c.l.b16 %v1128
        %v2009 = vunpack.c.l.b16 %v1129
        %v2010 = vunpack.c.l.b16 %v1130
        %v2011 = vunpack.c.l.b16 %v1131
        %v2012 = vunpack.c.l.b16 %v1132
        %v2013 = vunpack.c.l.b16 %v1133
        %v2014 = vunpack.c.l.b16 %v1134
        %v2015 = vunpack.c.l.b16 %v1135
        %v2016 = vunpack.c.l.b16 %v1136
        %v2017 = vunpack.c.l.b16 %v1137
        %v2018 = vunpack.c.l.b16 %v1138
        %v2019 = vunpack.c.l.b16 %v1139
        %v2020 = vunpack.c.l.b16 %v1140
        %v2021 = vunpack.c.l.b16 %v1141
        %v2022 = vunpack.c.l.b16 %v1142
        %v2023 = vunpack.c.l.b16 %v1143
        %v2024 = vpack.c.b16 %v1993, %v1992
        %v2025 = vpack.c.b16 %v1995, %v1994
        %v2026 = vpack.c.b16 %v1997, %v1996
        %v2027 = vpack.c.b16 %v1999, %v1998
        %v2028 = vpack.c.b16 %v2001, %v2000
        %v2029 = vpack.c.b16 %v2003, %v2002
        %v2030 = vpack.c.b16 %v2005, %v2004
        %v2031 = vpack.c.b16 %v2007, %v2006
        %v2032 = vpack.c.b16 %v2009, %v2008
        %v2033 = vpack.c.b16 %v2011, %v2010
        %v2034 = vpack.c.b16 %v2013, %v2012
        %v2035 = vpack.c.b16 %v2015, %v2014
        %v2036 = vpack.c.b16 %v2017, %v2016
        %v2037 = vpack.c.b16 %v2019, %v2018
        %v2038 = vpack.c.b16 %v2021, %v2020
        %v2039 = vpack.c.b16 %v2023, %v2022
        %2040 = vrot.lane.b32.xlu0 %v2024, 56
        %v2041 = vpop.permute.xlu0 %2040
        %2042 = vrot.lane.b32.xlu0 %v2025, 56
        %v2043 = vpop.permute.xlu0 %2042
        %2044 = vrot.lane.b32.xlu0 %v2026, 56
        %v2045 = vpop.permute.xlu0 %2044
        %2046 = vrot.lane.b32.xlu0 %v2027, 56
        %v2047 = vpop.permute.xlu0 %2046
        %2048 = vrot.lane.b32.xlu0 %v2028, 56
        %v2049 = vpop.permute.xlu0 %2048
        %2050 = vrot.lane.b32.xlu0 %v2029, 56
        %v2051 = vpop.permute.xlu0 %2050
        %2052 = vrot.lane.b32.xlu0 %v2030, 56
        %v2053 = vpop.permute.xlu0 %2052
        %2054 = vrot.lane.b32.xlu0 %v2031, 56
        %v2055 = vpop.permute.xlu0 %2054
        %2056 = vrot.lane.b32.xlu0 %v2032, 56
        %v2057 = vpop.permute.xlu0 %2056
        %2058 = vrot.lane.b32.xlu0 %v2033, 56
        %v2059 = vpop.permute.xlu0 %2058
        %2060 = vrot.lane.b32.xlu0 %v2034, 56
        %v2061 = vpop.permute.xlu0 %2060
        %2062 = vrot.lane.b32.xlu0 %v2035, 56
        %v2063 = vpop.permute.xlu0 %2062
        %2064 = vrot.lane.b32.xlu0 %v2036, 56
        %v2065 = vpop.permute.xlu0 %2064
        %2066 = vrot.lane.b32.xlu0 %v2037, 56
        %v2067 = vpop.permute.xlu0 %2066
        %2068 = vrot.lane.b32.xlu0 %v2038, 56
        %v2069 = vpop.permute.xlu0 %2068
        %2070 = vrot.lane.b32.xlu0 %v2039, 56
        %v2071 = vpop.permute.xlu0 %2070
        %v2104 = vunpack.c.l.b16 %v1176
        %v2105 = vunpack.c.l.b16 %v1177
        %v2106 = vunpack.c.l.b16 %v1178
        %v2107 = vunpack.c.l.b16 %v1179
        %v2108 = vunpack.c.l.b16 %v1180
        %v2109 = vunpack.c.l.b16 %v1181
        %v2110 = vunpack.c.l.b16 %v1182
        %v2111 = vunpack.c.l.b16 %v1183
        %v2112 = vunpack.c.l.b16 %v1184
        %v2113 = vunpack.c.l.b16 %v1185
        %v2114 = vunpack.c.l.b16 %v1186
        %v2115 = vunpack.c.l.b16 %v1187
        %v2116 = vunpack.c.l.b16 %v1188
        %v2117 = vunpack.c.l.b16 %v1189
        %v2118 = vunpack.c.l.b16 %v1190
        %v2119 = vunpack.c.l.b16 %v1191
        %v2120 = vunpack.c.l.b16 %v1192
        %v2121 = vunpack.c.l.b16 %v1193
        %v2122 = vunpack.c.l.b16 %v1194
        %v2123 = vunpack.c.l.b16 %v1195
        %v2124 = vunpack.c.l.b16 %v1196
        %v2125 = vunpack.c.l.b16 %v1197
        %v2126 = vunpack.c.l.b16 %v1198
        %v2127 = vunpack.c.l.b16 %v1199
        %v2128 = vunpack.c.l.b16 %v1200
        %v2129 = vunpack.c.l.b16 %v1201
        %v2130 = vunpack.c.l.b16 %v1202
        %v2131 = vunpack.c.l.b16 %v1203
        %v2132 = vunpack.c.l.b16 %v1204
        %v2133 = vunpack.c.l.b16 %v1205
        %v2134 = vunpack.c.l.b16 %v1206
        %v2135 = vunpack.c.l.b16 %v1207
        %v2136 = vpack.c.b16 %v2105, %v2104
        %v2137 = vpack.c.b16 %v2107, %v2106
        %v2138 = vpack.c.b16 %v2109, %v2108
        %v2139 = vpack.c.b16 %v2111, %v2110
        %v2140 = vpack.c.b16 %v2113, %v2112
        %v2141 = vpack.c.b16 %v2115, %v2114
        %v2142 = vpack.c.b16 %v2117, %v2116
        %v2143 = vpack.c.b16 %v2119, %v2118
        %v2144 = vpack.c.b16 %v2121, %v2120
        %v2145 = vpack.c.b16 %v2123, %v2122
        %v2146 = vpack.c.b16 %v2125, %v2124
        %v2147 = vpack.c.b16 %v2127, %v2126
        %v2148 = vpack.c.b16 %v2129, %v2128
        %v2149 = vpack.c.b16 %v2131, %v2130
        %v2150 = vpack.c.b16 %v2133, %v2132
        %v2151 = vpack.c.b16 %v2135, %v2134
        %2152 = vrot.lane.b32.xlu0 %v2136, 64
        %v2153 = vpop.permute.xlu0 %2152
        %2154 = vrot.lane.b32.xlu0 %v2137, 64
        %v2155 = vpop.permute.xlu0 %2154
        %2156 = vrot.lane.b32.xlu0 %v2138, 64
        %v2157 = vpop.permute.xlu0 %2156
        %2158 = vrot.lane.b32.xlu0 %v2139, 64
        %v2159 = vpop.permute.xlu0 %2158
        %2160 = vrot.lane.b32.xlu0 %v2140, 64
        %v2161 = vpop.permute.xlu0 %2160
        %2162 = vrot.lane.b32.xlu0 %v2141, 64
        %v2163 = vpop.permute.xlu0 %2162
        %2164 = vrot.lane.b32.xlu0 %v2142, 64
        %v2165 = vpop.permute.xlu0 %2164
        %2166 = vrot.lane.b32.xlu0 %v2143, 64
        %v2167 = vpop.permute.xlu0 %2166
        %2168 = vrot.lane.b32.xlu0 %v2144, 64
        %v2169 = vpop.permute.xlu0 %2168
        %2170 = vrot.lane.b32.xlu0 %v2145, 64
        %v2171 = vpop.permute.xlu0 %2170
        %2172 = vrot.lane.b32.xlu0 %v2146, 64
        %v2173 = vpop.permute.xlu0 %2172
        %2174 = vrot.lane.b32.xlu0 %v2147, 64
        %v2175 = vpop.permute.xlu0 %2174
        %2176 = vrot.lane.b32.xlu0 %v2148, 64
        %v2177 = vpop.permute.xlu0 %2176
        %2178 = vrot.lane.b32.xlu0 %v2149, 64
        %v2179 = vpop.permute.xlu0 %2178
        %2180 = vrot.lane.b32.xlu0 %v2150, 64
        %v2181 = vpop.permute.xlu0 %2180
        %2182 = vrot.lane.b32.xlu0 %v2151, 64
        %v2183 = vpop.permute.xlu0 %2182
        %v2186 = vsel %vm302, %v1272, %v1369
        %v2189 = vsel %vm302, %v1273, %v1371
        %v2192 = vsel %vm302, %v1274, %v1373
        %v2195 = vsel %vm302, %v1275, %v1375
        %v2198 = vsel %vm302, %v1276, %v1377
        %v2201 = vsel %vm302, %v1277, %v1379
        %v2204 = vsel %vm302, %v1278, %v1381
        %v2207 = vsel %vm302, %v1279, %v1383
        %v2210 = vsel %vm302, %v1280, %v1385
        %v2213 = vsel %vm302, %v1281, %v1387
        %v2216 = vsel %vm302, %v1282, %v1389
        %v2219 = vsel %vm302, %v1283, %v1391
        %v2222 = vsel %vm302, %v1284, %v1393
        %v2225 = vsel %vm302, %v1285, %v1395
        %v2228 = vsel %vm302, %v1286, %v1397
        %v2231 = vsel %vm302, %v1287, %v1399
        %vm2232 = vcmask 130048
        %v2234 = vsel %vm2232, %v2186, %v1481
        %v2236 = vsel %vm2232, %v2189, %v1483
        %v2238 = vsel %vm2232, %v2192, %v1485
        %v2240 = vsel %vm2232, %v2195, %v1487
        %v2242 = vsel %vm2232, %v2198, %v1489
        %v2244 = vsel %vm2232, %v2201, %v1491
        %v2246 = vsel %vm2232, %v2204, %v1493
        %v2248 = vsel %vm2232, %v2207, %v1495
        %v2250 = vsel %vm2232, %v2210, %v1497
        %v2252 = vsel %vm2232, %v2213, %v1499
        %v2254 = vsel %vm2232, %v2216, %v1501
        %v2256 = vsel %vm2232, %v2219, %v1503
        %v2258 = vsel %vm2232, %v2222, %v1505
        %v2260 = vsel %vm2232, %v2225, %v1507
        %v2262 = vsel %vm2232, %v2228, %v1509
        %v2264 = vsel %vm2232, %v2231, %v1511
        %vm2265 = vcmask 195584
        %v2267 = vsel %vm2265, %v2234, %v1593
        %v2269 = vsel %vm2265, %v2236, %v1595
        %v2271 = vsel %vm2265, %v2238, %v1597
        %v2273 = vsel %vm2265, %v2240, %v1599
        %v2275 = vsel %vm2265, %v2242, %v1601
        %v2277 = vsel %vm2265, %v2244, %v1603
        %v2279 = vsel %vm2265, %v2246, %v1605
        %v2281 = vsel %vm2265, %v2248, %v1607
        %v2283 = vsel %vm2265, %v2250, %v1609
        %v2285 = vsel %vm2265, %v2252, %v1611
        %v2287 = vsel %vm2265, %v2254, %v1613
        %v2289 = vsel %vm2265, %v2256, %v1615
        %v2291 = vsel %vm2265, %v2258, %v1617
        %v2293 = vsel %vm2265, %v2260, %v1619
        %v2295 = vsel %vm2265, %v2262, %v1621
        %v2297 = vsel %vm2265, %v2264, %v1623
        %v2299 = vsel %vm428, %v2267, %v1705
        %v2301 = vsel %vm428, %v2269, %v1707
        %v2303 = vsel %vm428, %v2271, %v1709
        %v2305 = vsel %vm428, %v2273, %v1711
        %v2307 = vsel %vm428, %v2275, %v1713
        %v2309 = vsel %vm428, %v2277, %v1715
        %v2311 = vsel %vm428, %v2279, %v1717
        %v2313 = vsel %vm428, %v2281, %v1719
        %v2315 = vsel %vm428, %v2283, %v1721
        %v2317 = vsel %vm428, %v2285, %v1723
        %v2319 = vsel %vm428, %v2287, %v1725
        %v2321 = vsel %vm428, %v2289, %v1727
        %v2323 = vsel %vm428, %v2291, %v1729
        %v2325 = vsel %vm428, %v2293, %v1731
        %v2327 = vsel %vm428, %v2295, %v1733
        %v2329 = vsel %vm428, %v2297, %v1735
        %vm2330 = vcmask 326656
        %v2332 = vsel %vm2330, %v2299, %v1817
        %v2334 = vsel %vm2330, %v2301, %v1819
        %v2336 = vsel %vm2330, %v2303, %v1821
        %v2338 = vsel %vm2330, %v2305, %v1823
        %v2340 = vsel %vm2330, %v2307, %v1825
        %v2342 = vsel %vm2330, %v2309, %v1827
        %v2344 = vsel %vm2330, %v2311, %v1829
        %v2346 = vsel %vm2330, %v2313, %v1831
        %v2348 = vsel %vm2330, %v2315, %v1833
        %v2350 = vsel %vm2330, %v2317, %v1835
        %v2352 = vsel %vm2330, %v2319, %v1837
        %v2354 = vsel %vm2330, %v2321, %v1839
        %v2356 = vsel %vm2330, %v2323, %v1841
        %v2358 = vsel %vm2330, %v2325, %v1843
        %v2360 = vsel %vm2330, %v2327, %v1845
        %v2362 = vsel %vm2330, %v2329, %v1847
        %vm2363 = vcmask 392192
        %v2365 = vsel %vm2363, %v2332, %v1929
        %v2367 = vsel %vm2363, %v2334, %v1931
        %v2369 = vsel %vm2363, %v2336, %v1933
        %v2371 = vsel %vm2363, %v2338, %v1935
        %v2373 = vsel %vm2363, %v2340, %v1937
        %v2375 = vsel %vm2363, %v2342, %v1939
        %v2377 = vsel %vm2363, %v2344, %v1941
        %v2379 = vsel %vm2363, %v2346, %v1943
        %v2381 = vsel %vm2363, %v2348, %v1945
        %v2383 = vsel %vm2363, %v2350, %v1947
        %v2385 = vsel %vm2363, %v2352, %v1949
        %v2387 = vsel %vm2363, %v2354, %v1951
        %v2389 = vsel %vm2363, %v2356, %v1953
        %v2391 = vsel %vm2363, %v2358, %v1955
        %v2393 = vsel %vm2363, %v2360, %v1957
        %v2395 = vsel %vm2363, %v2362, %v1959
        %vm2396 = vcmask 457728
        %v2398 = vsel %vm2396, %v2365, %v2041
        %v2400 = vsel %vm2396, %v2367, %v2043
        %v2402 = vsel %vm2396, %v2369, %v2045
        %v2404 = vsel %vm2396, %v2371, %v2047
        %v2406 = vsel %vm2396, %v2373, %v2049
        %v2408 = vsel %vm2396, %v2375, %v2051
        %v2410 = vsel %vm2396, %v2377, %v2053
        %v2412 = vsel %vm2396, %v2379, %v2055
        %v2414 = vsel %vm2396, %v2381, %v2057
        %v2416 = vsel %vm2396, %v2383, %v2059
        %v2418 = vsel %vm2396, %v2385, %v2061
        %v2420 = vsel %vm2396, %v2387, %v2063
        %v2422 = vsel %vm2396, %v2389, %v2065
        %v2424 = vsel %vm2396, %v2391, %v2067
        %v2426 = vsel %vm2396, %v2393, %v2069
        %v2428 = vsel %vm2396, %v2395, %v2071
        %vm2429 = vcmask 523264
        %v2431 = vsel %vm2429, %v2398, %v2153
        %v2433 = vsel %vm2429, %v2400, %v2155
        %v2435 = vsel %vm2429, %v2402, %v2157
        %v2437 = vsel %vm2429, %v2404, %v2159
        %v2439 = vsel %vm2429, %v2406, %v2161
        %v2441 = vsel %vm2429, %v2408, %v2163
        %v2443 = vsel %vm2429, %v2410, %v2165
        %v2445 = vsel %vm2429, %v2412, %v2167
        %v2447 = vsel %vm2429, %v2414, %v2169
        %v2449 = vsel %vm2429, %v2416, %v2171
        %v2451 = vsel %vm2429, %v2418, %v2173
        %v2453 = vsel %vm2429, %v2420, %v2175
        %v2455 = vsel %vm2429, %v2422, %v2177
        %v2457 = vsel %vm2429, %v2424, %v2179
        %v2459 = vsel %vm2429, %v2426, %v2181
        %v2461 = vsel %vm2429, %v2428, %v2183
        %v2463 = vperm.slane %v363, 0
        %v2474 = vunpack.c.l.b16 %v352
        %v2475 = vunpack.c.l.b16 %v353
        %v2476 = vunpack.c.l.b16 %v354
        %v2477 = vunpack.c.l.b16 %v355
        %v2478 = vunpack.c.l.b16 %v356
        %v2479 = vunpack.c.l.b16 %v357
        %v2480 = vunpack.c.l.b16 %v358
        %v2481 = vunpack.c.l.b16 %v359
        %v2482 = vunpack.c.l.b16 %v360
        %v2483 = vpack.c.b16 %v2475, %v2474
        %v2484 = vpack.c.b16 %v2477, %v2476
        %v2485 = vpack.c.b16 %v2479, %v2478
        %v2486 = vpack.c.b16 %v2481, %v2480
        %v2487 = vpack.c.b16 %v2482, %v2482
        %vm2492 = vcmask 588800
        %v2493 = vsel %vm2492, %v2431, 0
        %v2495 = vsel %vm2492, %v2433, 0
        %v2497 = vsel %vm2492, %v2435, 0
        %v2499 = vsel %vm2492, %v2437, 0
        %v2501 = vsel %vm2492, %v2439, 0
        %v2503 = vsel %vm2492, %v2441, 0
        %v2505 = vsel %vm2492, %v2443, 0
        %v2507 = vsel %vm2492, %v2445, 0
        %v2509 = vsel %vm2492, %v2447, 0
        %v2511 = vsel %vm2492, %v2449, 0
        %v2513 = vsel %vm2492, %v2451, 0
        %v2515 = vsel %vm2492, %v2453, 0
        %v2517 = vsel %vm2492, %v2455, 0
        %v2519 = vsel %vm2492, %v2457, 0
        %v2521 = vsel %vm2492, %v2459, 0
        %v2523 = vsel %vm2492, %v2461, 0
        %vm2525 = vcmask 1043456
        %v2527 = vsel %vm2525, %v2487, 0
        %2529 = vmatpush.bf16.msra.mxu0 0
        %2530 = vmatpush.bf16.msra.mxu0 0
        %2531 = vmatpush.bf16.msra.mxu0 0
        %2532 = vmatpush.bf16.msra.mxu0 %v2527
        %2533 = vmatpush.bf16.msra.mxu0 %v2486
        %2534 = vmatpush.bf16.msra.mxu0 %v2485
        %2535 = vmatpush.bf16.msra.mxu0 %v2484
        %2536 = vmatpush.bf16.msra.mxu0 %v2483
        %2537 = vmatmul.bf16.gmra.mxu0 %v2493
        %v2538 = vpop.f32.mrf.mxu0
        %v2539 = vadd.f32 %v2463, %v2538
        %v2540 = vpop.f32.mrf.mxu0
        %v2541 = vadd.f32 %v2463, %v2540
        %2542 = vmatmul.bf16.gmra.mxu0 %v2495
        %v2543 = vpop.f32.mrf.mxu0
        %v2544 = vadd.f32 %v2463, %v2543
        %v2545 = vpop.f32.mrf.mxu0
        %v2546 = vadd.f32 %v2463, %v2545
        %2547 = vmatmul.bf16.gmra.mxu0 %v2497
        %v2548 = vpop.f32.mrf.mxu0
        %v2549 = vadd.f32 %v2463, %v2548
        %v2550 = vpop.f32.mrf.mxu0
        %v2551 = vadd.f32 %v2463, %v2550
        %2552 = vmatmul.bf16.gmra.mxu0 %v2499
        %v2553 = vpop.f32.mrf.mxu0
        %v2554 = vadd.f32 %v2463, %v2553
        %v2555 = vpop.f32.mrf.mxu0
        %v2556 = vadd.f32 %v2463, %v2555
        %2557 = vmatmul.bf16.gmra.mxu0 %v2501
        %v2558 = vpop.f32.mrf.mxu0
        %v2559 = vadd.f32 %v2463, %v2558
        %v2560 = vpop.f32.mrf.mxu0
        %v2561 = vadd.f32 %v2463, %v2560
        %2562 = vmatmul.bf16.gmra.mxu0 %v2503
        %v2563 = vpop.f32.mrf.mxu0
        %v2564 = vadd.f32 %v2463, %v2563
        %v2565 = vpop.f32.mrf.mxu0
        %v2566 = vadd.f32 %v2463, %v2565
        %2567 = vmatmul.bf16.gmra.mxu0 %v2505
        %v2568 = vpop.f32.mrf.mxu0
        %v2569 = vadd.f32 %v2463, %v2568
        %v2570 = vpop.f32.mrf.mxu0
        %v2571 = vadd.f32 %v2463, %v2570
        %2572 = vmatmul.bf16.gmra.mxu0 %v2507
        %v2573 = vpop.f32.mrf.mxu0
        %v2574 = vadd.f32 %v2463, %v2573
        %v2575 = vpop.f32.mrf.mxu0
        %v2576 = vadd.f32 %v2463, %v2575
        %2577 = vmatmul.bf16.gmra.mxu0 %v2509
        %v2578 = vpop.f32.mrf.mxu0
        %v2579 = vadd.f32 %v2463, %v2578
        %v2580 = vpop.f32.mrf.mxu0
        %v2581 = vadd.f32 %v2463, %v2580
        %2582 = vmatmul.bf16.gmra.mxu0 %v2511
        %v2583 = vpop.f32.mrf.mxu0
        %v2584 = vadd.f32 %v2463, %v2583
        %v2585 = vpop.f32.mrf.mxu0
        %v2586 = vadd.f32 %v2463, %v2585
        %2587 = vmatmul.bf16.gmra.mxu0 %v2513
        %v2588 = vpop.f32.mrf.mxu0
        %v2589 = vadd.f32 %v2463, %v2588
        %v2590 = vpop.f32.mrf.mxu0
        %v2591 = vadd.f32 %v2463, %v2590
        %2592 = vmatmul.bf16.gmra.mxu0 %v2515
        %v2593 = vpop.f32.mrf.mxu0
        %v2594 = vadd.f32 %v2463, %v2593
        %v2595 = vpop.f32.mrf.mxu0
        %v2596 = vadd.f32 %v2463, %v2595
        %2597 = vmatmul.bf16.gmra.mxu0 %v2517
        %v2598 = vpop.f32.mrf.mxu0
        %v2599 = vadd.f32 %v2463, %v2598
        %v2600 = vpop.f32.mrf.mxu0
        %v2601 = vadd.f32 %v2463, %v2600
        %2602 = vmatmul.bf16.gmra.mxu0 %v2519
        %v2603 = vpop.f32.mrf.mxu0
        %v2604 = vadd.f32 %v2463, %v2603
        %v2605 = vpop.f32.mrf.mxu0
        %v2606 = vadd.f32 %v2463, %v2605
        %2607 = vmatmul.bf16.gmra.mxu0 %v2521
        %v2608 = vpop.f32.mrf.mxu0
        %v2609 = vadd.f32 %v2463, %v2608
        %v2610 = vpop.f32.mrf.mxu0
        %v2611 = vadd.f32 %v2463, %v2610
        %2612 = vmatmul.bf16.gmra.mxu0 %v2523
        %v2613 = vpop.f32.mrf.mxu0
        %v2614 = vadd.f32 %v2463, %v2613
        %v2615 = vpop.f32.mrf.mxu0
        %v2616 = vadd.f32 %v2463, %v2615
        %2617 = vdwg.mxu0
        %v2618 = vmax.f32 %v2539, 0.0
        %v2619 = vmax.f32 %v2541, 0.0
        %v2620 = vmax.f32 %v2544, 0.0
        %v2621 = vmax.f32 %v2546, 0.0
        %v2622 = vmax.f32 %v2549, 0.0
        %v2623 = vmax.f32 %v2551, 0.0
        %v2624 = vmax.f32 %v2554, 0.0
        %v2625 = vmax.f32 %v2556, 0.0
        %v2626 = vmax.f32 %v2559, 0.0
        %v2627 = vmax.f32 %v2561, 0.0
        %v2628 = vmax.f32 %v2564, 0.0
        %v2629 = vmax.f32 %v2566, 0.0
        %v2630 = vmax.f32 %v2569, 0.0
        %v2631 = vmax.f32 %v2571, 0.0
        %v2632 = vmax.f32 %v2574, 0.0
        %v2633 = vmax.f32 %v2576, 0.0
        %v2634 = vmax.f32 %v2579, 0.0
        %v2635 = vmax.f32 %v2581, 0.0
        %v2636 = vmax.f32 %v2584, 0.0
        %v2637 = vmax.f32 %v2586, 0.0
        %v2638 = vmax.f32 %v2589, 0.0
        %v2639 = vmax.f32 %v2591, 0.0
        %v2640 = vmax.f32 %v2594, 0.0
        %v2641 = vmax.f32 %v2596, 0.0
        %v2642 = vmax.f32 %v2599, 0.0
        %v2643 = vmax.f32 %v2601, 0.0
        %v2644 = vmax.f32 %v2604, 0.0
        %v2645 = vmax.f32 %v2606, 0.0
        %v2646 = vmax.f32 %v2609, 0.0
        %v2647 = vmax.f32 %v2611, 0.0
        %v2648 = vmax.f32 %v2614, 0.0
        %v2649 = vmax.f32 %v2616, 0.0
        %v2650 = vpack.c.bf16 %v2619, %v2618
        %v2651 = vpack.c.bf16 %v2621, %v2620
        %v2652 = vpack.c.bf16 %v2623, %v2622
        %v2653 = vpack.c.bf16 %v2625, %v2624
        %v2654 = vpack.c.bf16 %v2627, %v2626
        %v2655 = vpack.c.bf16 %v2629, %v2628
        %v2656 = vpack.c.bf16 %v2631, %v2630
        %v2657 = vpack.c.bf16 %v2633, %v2632
        %v2658 = vpack.c.bf16 %v2635, %v2634
        %v2659 = vpack.c.bf16 %v2637, %v2636
        %v2660 = vpack.c.bf16 %v2639, %v2638
        %v2661 = vpack.c.bf16 %v2641, %v2640
        %v2662 = vpack.c.bf16 %v2643, %v2642
        %v2663 = vpack.c.bf16 %v2645, %v2644
        %v2664 = vpack.c.bf16 %v2647, %v2646
        %v2665 = vpack.c.bf16 %v2649, %v2648
        %v2667 = vperm.slane %v364, 0
        %v2670 = vsel %vm302, %v2650, 0
        %v2673 = vsel %vm302, %v2651, 0
        %v2676 = vsel %vm302, %v2652, 0
        %v2679 = vsel %vm302, %v2653, 0
        %v2682 = vsel %vm302, %v2654, 0
        %v2685 = vsel %vm302, %v2655, 0
        %v2688 = vsel %vm302, %v2656, 0
        %v2691 = vsel %vm302, %v2657, 0
        %v2694 = vsel %vm302, %v2658, 0
        %v2697 = vsel %vm302, %v2659, 0
        %v2700 = vsel %vm302, %v2660, 0
        %v2703 = vsel %vm302, %v2661, 0
        %v2706 = vsel %vm302, %v2662, 0
        %v2709 = vsel %vm302, %v2663, 0
        %v2712 = vsel %vm302, %v2664, 0
        %v2715 = vsel %vm302, %v2665, 0
        %v2718 = vsel %vm2525, %v361, 0
        %2720 = vmatpush.bf16.msra.mxu0 0
        %2721 = vmatpush.bf16.msra.mxu0 0
        %2722 = vmatpush.bf16.msra.mxu0 0
        %2723 = vmatpush.bf16.msra.mxu0 0
        %2724 = vmatpush.bf16.msra.mxu0 0
        %2725 = vmatpush.bf16.msra.mxu0 0
        %2726 = vmatpush.bf16.msra.mxu0 0
        %2727 = vmatpush.bf16.msra.mxu0 %v2718
        %2728 = vmatmul.bf16.gmra.mxu0 %v2670
        %v2729 = vpop.f32.mrf.mxu0
        %v2730 = vadd.f32 %v2667, %v2729
        %v2731 = vpop.f32.mrf.mxu0
        %v2732 = vadd.f32 %v2667, %v2731
        %2733 = vmatmul.bf16.gmra.mxu0 %v2673
        %v2734 = vpop.f32.mrf.mxu0
        %v2735 = vadd.f32 %v2667, %v2734
        %v2736 = vpop.f32.mrf.mxu0
        %v2737 = vadd.f32 %v2667, %v2736
        %2738 = vmatmul.bf16.gmra.mxu0 %v2676
        %v2739 = vpop.f32.mrf.mxu0
        %v2740 = vadd.f32 %v2667, %v2739
        %v2741 = vpop.f32.mrf.mxu0
        %v2742 = vadd.f32 %v2667, %v2741
        %2743 = vmatmul.bf16.gmra.mxu0 %v2679
        %v2744 = vpop.f32.mrf.mxu0
        %v2745 = vadd.f32 %v2667, %v2744
        %v2746 = vpop.f32.mrf.mxu0
        %v2747 = vadd.f32 %v2667, %v2746
        %2748 = vmatmul.bf16.gmra.mxu0 %v2682
        %v2749 = vpop.f32.mrf.mxu0
        %v2750 = vadd.f32 %v2667, %v2749
        %v2751 = vpop.f32.mrf.mxu0
        %v2752 = vadd.f32 %v2667, %v2751
        %2753 = vmatmul.bf16.gmra.mxu0 %v2685
        %v2754 = vpop.f32.mrf.mxu0
        %v2755 = vadd.f32 %v2667, %v2754
        %v2756 = vpop.f32.mrf.mxu0
        %v2757 = vadd.f32 %v2667, %v2756
        %2758 = vmatmul.bf16.gmra.mxu0 %v2688
        %v2759 = vpop.f32.mrf.mxu0
        %v2760 = vadd.f32 %v2667, %v2759
        %v2761 = vpop.f32.mrf.mxu0
        %v2762 = vadd.f32 %v2667, %v2761
        %2763 = vmatmul.bf16.gmra.mxu0 %v2691
        %v2764 = vpop.f32.mrf.mxu0
        %v2765 = vadd.f32 %v2667, %v2764
        %v2766 = vpop.f32.mrf.mxu0
        %v2767 = vadd.f32 %v2667, %v2766
        %2768 = vmatmul.bf16.gmra.mxu0 %v2694
        %v2769 = vpop.f32.mrf.mxu0
        %v2770 = vadd.f32 %v2667, %v2769
        %v2771 = vpop.f32.mrf.mxu0
        %v2772 = vadd.f32 %v2667, %v2771
        %2773 = vmatmul.bf16.gmra.mxu0 %v2697
        %v2774 = vpop.f32.mrf.mxu0
        %v2775 = vadd.f32 %v2667, %v2774
        %v2776 = vpop.f32.mrf.mxu0
        %v2777 = vadd.f32 %v2667, %v2776
        %2778 = vmatmul.bf16.gmra.mxu0 %v2700
        %v2779 = vpop.f32.mrf.mxu0
        %v2780 = vadd.f32 %v2667, %v2779
        %v2781 = vpop.f32.mrf.mxu0
        %v2782 = vadd.f32 %v2667, %v2781
        %2783 = vmatmul.bf16.gmra.mxu0 %v2703
        %v2784 = vpop.f32.mrf.mxu0
        %v2785 = vadd.f32 %v2667, %v2784
        %v2786 = vpop.f32.mrf.mxu0
        %v2787 = vadd.f32 %v2667, %v2786
        %2788 = vmatmul.bf16.gmra.mxu0 %v2706
        %v2789 = vpop.f32.mrf.mxu0
        %v2790 = vadd.f32 %v2667, %v2789
        %v2791 = vpop.f32.mrf.mxu0
        %v2792 = vadd.f32 %v2667, %v2791
        %2793 = vmatmul.bf16.gmra.mxu0 %v2709
        %v2794 = vpop.f32.mrf.mxu0
        %v2795 = vadd.f32 %v2667, %v2794
        %v2796 = vpop.f32.mrf.mxu0
        %v2797 = vadd.f32 %v2667, %v2796
        %2798 = vmatmul.bf16.gmra.mxu0 %v2712
        %v2799 = vpop.f32.mrf.mxu0
        %v2800 = vadd.f32 %v2667, %v2799
        %v2801 = vpop.f32.mrf.mxu0
        %v2802 = vadd.f32 %v2667, %v2801
        %2803 = vmatmul.bf16.gmra.mxu0 %v2715
        %v2804 = vpop.f32.mrf.mxu0
        %v2805 = vadd.f32 %v2667, %v2804
        %v2806 = vpop.f32.mrf.mxu0
        %v2807 = vadd.f32 %v2667, %v2806
        %2808 = vdwg.mxu0
        %v2809 = vld [vmem:[%s264] sm:$0xff]
        %v2810 = vld [vmem:[%s264 + $0x8] sm:$0xff]
        %v2811 = vld [vmem:[%s264 + $0x10] sm:$0xff]
        %v2812 = vld [vmem:[%s264 + $0x18] sm:$0xff]
        %v2813 = vld [vmem:[%s264 + $0x20] sm:$0xff]
        %v2814 = vld [vmem:[%s264 + $0x28] sm:$0xff]
        %v2815 = vld [vmem:[%s264 + $0x30] sm:$0xff]
        %v2816 = vld [vmem:[%s264 + $0x38] sm:$0xff]
        %v2817 = vld [vmem:[%s264 + $0x40] sm:$0xff]
        %v2818 = vld [vmem:[%s264 + $0x48] sm:$0xff]
        %v2819 = vld [vmem:[%s264 + $0x50] sm:$0xff]
        %v2820 = vld [vmem:[%s264 + $0x58] sm:$0xff]
        %v2821 = vld [vmem:[%s264 + $0x60] sm:$0xff]
        %v2822 = vld [vmem:[%s264 + $0x68] sm:$0xff]
        %v2823 = vld [vmem:[%s264 + $0x70] sm:$0xff]
        %v2824 = vld [vmem:[%s264 + $0x78] sm:$0xff]
        %v2825 = vld [vmem:[%s264 + $0x80] sm:$0xff]
        %v2826 = vld [vmem:[%s264 + $0x88] sm:$0xff]
        %v2827 = vld [vmem:[%s264 + $0x90] sm:$0xff]
        %v2828 = vld [vmem:[%s264 + $0x98] sm:$0xff]
        %v2829 = vld [vmem:[%s264 + $0xa0] sm:$0xff]
        %v2830 = vld [vmem:[%s264 + $0xa8] sm:$0xff]
        %v2831 = vld [vmem:[%s264 + $0xb0] sm:$0xff]
        %v2832 = vld [vmem:[%s264 + $0xb8] sm:$0xff]
        %v2833 = vld [vmem:[%s264 + $0xc0] sm:$0xff]
        %v2834 = vld [vmem:[%s264 + $0xc8] sm:$0xff]
        %v2835 = vld [vmem:[%s264 + $0xd0] sm:$0xff]
        %v2836 = vld [vmem:[%s264 + $0xd8] sm:$0xff]
        %v2837 = vld [vmem:[%s264 + $0xe0] sm:$0xff]
        %v2838 = vld [vmem:[%s264 + $0xe8] sm:$0xff]
        %v2839 = vld [vmem:[%s264 + $0xf0] sm:$0xff]
        %v2840 = vld [vmem:[%s264 + $0xf8] sm:$0xff]
        %v2841 = vadd.f32 %v2730, %v2809
        %v2842 = vadd.f32 %v2732, %v2810
        %v2843 = vadd.f32 %v2735, %v2811
        %v2844 = vadd.f32 %v2737, %v2812
        %v2845 = vadd.f32 %v2740, %v2813
        %v2846 = vadd.f32 %v2742, %v2814
        %v2847 = vadd.f32 %v2745, %v2815
        %v2848 = vadd.f32 %v2747, %v2816
        %v2849 = vadd.f32 %v2750, %v2817
        %v2850 = vadd.f32 %v2752, %v2818
        %v2851 = vadd.f32 %v2755, %v2819
        %v2852 = vadd.f32 %v2757, %v2820
        %v2853 = vadd.f32 %v2760, %v2821
        %v2854 = vadd.f32 %v2762, %v2822
        %v2855 = vadd.f32 %v2765, %v2823
        %v2856 = vadd.f32 %v2767, %v2824
        %v2857 = vadd.f32 %v2770, %v2825
        %v2858 = vadd.f32 %v2772, %v2826
        %v2859 = vadd.f32 %v2775, %v2827
        %v2860 = vadd.f32 %v2777, %v2828
        %v2861 = vadd.f32 %v2780, %v2829
        %v2862 = vadd.f32 %v2782, %v2830
        %v2863 = vadd.f32 %v2785, %v2831
        %v2864 = vadd.f32 %v2787, %v2832
        %v2865 = vadd.f32 %v2790, %v2833
        %v2866 = vadd.f32 %v2792, %v2834
        %v2867 = vadd.f32 %v2795, %v2835
        %v2868 = vadd.f32 %v2797, %v2836
        %v2869 = vadd.f32 %v2800, %v2837
        %v2870 = vadd.f32 %v2802, %v2838
        %v2871 = vadd.f32 %v2805, %v2839
        %v2872 = vadd.f32 %v2807, %v2840
        %2873 = vst.msk [vmem:[%s300] sm:$0xff] %vm428, %v2841
        %2874 = vst.msk [vmem:[%s300 + $0x8] sm:$0xff] %vm428, %v2842
        %2875 = vst.msk [vmem:[%s300 + $0x10] sm:$0xff] %vm428, %v2843
        %2876 = vst.msk [vmem:[%s300 + $0x18] sm:$0xff] %vm428, %v2844
        %2877 = vst.msk [vmem:[%s300 + $0x20] sm:$0xff] %vm428, %v2845
        %2878 = vst.msk [vmem:[%s300 + $0x28] sm:$0xff] %vm428, %v2846
        %2879 = vst.msk [vmem:[%s300 + $0x30] sm:$0xff] %vm428, %v2847
        %2880 = vst.msk [vmem:[%s300 + $0x38] sm:$0xff] %vm428, %v2848
        %2881 = vst.msk [vmem:[%s300 + $0x40] sm:$0xff] %vm428, %v2849
        %2882 = vst.msk [vmem:[%s300 + $0x48] sm:$0xff] %vm428, %v2850
        %2883 = vst.msk [vmem:[%s300 + $0x50] sm:$0xff] %vm428, %v2851
        %2884 = vst.msk [vmem:[%s300 + $0x58] sm:$0xff] %vm428, %v2852
        %2885 = vst.msk [vmem:[%s300 + $0x60] sm:$0xff] %vm428, %v2853
        %2886 = vst.msk [vmem:[%s300 + $0x68] sm:$0xff] %vm428, %v2854
        %2887 = vst.msk [vmem:[%s300 + $0x70] sm:$0xff] %vm428, %v2855
        %2888 = vst.msk [vmem:[%s300 + $0x78] sm:$0xff] %vm428, %v2856
        %2889 = vst.msk [vmem:[%s300 + $0x80] sm:$0xff] %vm428, %v2857
        %2890 = vst.msk [vmem:[%s300 + $0x88] sm:$0xff] %vm428, %v2858
        %2891 = vst.msk [vmem:[%s300 + $0x90] sm:$0xff] %vm428, %v2859
        %2892 = vst.msk [vmem:[%s300 + $0x98] sm:$0xff] %vm428, %v2860
        %2893 = vst.msk [vmem:[%s300 + $0xa0] sm:$0xff] %vm428, %v2861
        %2894 = vst.msk [vmem:[%s300 + $0xa8] sm:$0xff] %vm428, %v2862
        %2895 = vst.msk [vmem:[%s300 + $0xb0] sm:$0xff] %vm428, %v2863
        %2896 = vst.msk [vmem:[%s300 + $0xb8] sm:$0xff] %vm428, %v2864
        %2897 = vst.msk [vmem:[%s300 + $0xc0] sm:$0xff] %vm428, %v2865
        %2898 = vst.msk [vmem:[%s300 + $0xc8] sm:$0xff] %vm428, %v2866
        %2899 = vst.msk [vmem:[%s300 + $0xd0] sm:$0xff] %vm428, %v2867
        %2900 = vst.msk [vmem:[%s300 + $0xd8] sm:$0xff] %vm428, %v2868
        %2901 = vst.msk [vmem:[%s300 + $0xe0] sm:$0xff] %vm428, %v2869
        %2902 = vst.msk [vmem:[%s300 + $0xe8] sm:$0xff] %vm428, %v2870
        %2903 = vst.msk [vmem:[%s300 + $0xf0] sm:$0xff] %vm428, %v2871
        %2904 = vst.msk [vmem:[%s300 + $0xf8] sm:$0xff] %vm428, %v2872
        %p2905 = scmp.lt.s32.totalorder %s21, 1
        %s2906 = scalar_select %p2905, %s21, 1
        %s2907 = smul.addr %s2906, 32
        %s2908 = smul.addr %s2907, 8
        %s2909 = scalar_lea.vmem %s7, %s2908
        // Predicated region
        $region53: #{bottleneck_forward.1} parent=47 // pred_check
          %p2910 = pneg %p191
        $region54: #{bottleneck_forward.1} parent=47 // pred_check_branch
          %2912 = sbr.rel (%p2910) target = $region56
        $region55: #{bottleneck_forward.1} parent=47 // pred_region
          _
        $region56: #{bottleneck_forward.1} parent=47 // pred_fallthru
          _
      $region48: #{bottleneck_forward.1} parent=5 // pred_fallthru
        _
      %p2913 = scmp.le.s32.totalorder 2, %s16
      // Predicated region
      $region57: #{bottleneck_forward.1} parent=5 // pred_check
        %p2914 = pneg %p2913
      $region58: #{bottleneck_forward.1} parent=5 // pred_check_branch
        %2916 = sbr.rel (%p2914) target = $region60
      $region59: #{bottleneck_forward.1} parent=5 // pred_region
        %s2917 = ssub.s32 %s16, 2
        // Predicated region
        $region61: #{bottleneck_forward.1} parent=59 // pred_check
          %p2918 = pneg %p197
        $region62: #{bottleneck_forward.1} parent=59 // pred_check_branch
          %2920 = sbr.rel (%p2918) target = $region64
        $region63: #{bottleneck_forward.1} parent=59 // pred_region
          %p2921 = scmp.lt.s32.totalorder %s22, 1
          %s2922 = scalar_select %p2921, %s22, 1
          %s2923 = smul.addr %s2922, 32
          %s2924 = smul.addr %s2923, 8
          %s2925 = scalar_lea.vmem %s7, %s2924
        $region64: #{bottleneck_forward.1} parent=59 // pred_fallthru
          _
      $region60: #{bottleneck_forward.1} parent=5 // pred_fallthru
        _
    $region6: #{bottleneck_forward.1} parent=1 // loop_footer
      %s20 = sadd.s32 1, %s16
    $region7: #{bottleneck_forward.1} parent=1 // loop_footer_branch
      %15 = sbr.rel target = $region3
    $region8: #{bottleneck_forward.1} parent=1 // loop_exit
      _
    %2926 = vsyncpa [#allocation4], 1
    %s2927 = scalar_lea.sflag [#allocation4], 1
    %2928 = vsyncpa %s2927, 1

</llo_original>
